<compile_context>
chip_gen: v7x
topology: tpu7x:2x2x1
jax: 0.10.0
libtpu: 0.0.40
codegen_flags: <defaults>
</compile_context>

<pallas_src>
import jax
import jax.numpy as jnp
from jax.experimental import pallas as pl
from jax.experimental.pallas import tpu as pltpu

NEG_SLOPE = 0.2
EPS = 1e-5


def _make_resblock_kernel(H, W, C, G):
    HW = H * W
    Cg = C // G
    inv_cnt = 1.0 / float(HW * Cg)
    TAPS = tuple((dy, dx) for dy in (-1, 0, 1) for dx in (-1, 0, 1))

    def kernel(x_ref, p_ref, mask_ref, w1_ref, w2_ref, o_ref):
        x = x_ref[0]                                     # (C, HW) f32, lane-dense
        g1, b1, cb1 = p_ref[:, 0:1], p_ref[:, 1:2], p_ref[:, 2:3]
        g2, b2, cb2 = p_ref[:, 3:4], p_ref[:, 4:5], p_ref[:, 5:6]
        gid = p_ref[:, 6:7]                              # (C, 1) group id as f32

        # Border-validity masks, one (1, HW) row per tap (hoisted; reused by both convs).
        masks = [None if (dy == 0 and dx == 0) else mask_ref[t:t + 1, :]
                 for t, (dy, dx) in enumerate(TAPS)]

        def group_reduce_bcast(col):                     # (C,1) -> per-channel group sums
            out = jnp.zeros_like(col)
            for g in range(G):                           # G is small & static
                tot = jnp.sum(col[g * Cg:(g + 1) * Cg, :], axis=0, keepdims=True)  # (1,1)
                out = jnp.where(gid == float(g), tot, out)
            return out

        def gn_act(z, gamma, beta):                      # GroupNorm (biased var) + LeakyReLU
            mean_c = group_reduce_bcast(jnp.sum(z, axis=1, keepdims=True)) * inv_cnt
            d = z - mean_c                               # two-pass variance (better precision)
            var_c = group_reduce_bcast(jnp.sum(d * d, axis=1, keepdims=True)) * inv_cnt
            inv_c = jax.lax.rsqrt(var_c + EPS)
            y = d * (gamma * inv_c) + beta
            return jnp.where(y >= 0, y, NEG_SLOPE * y)

        def conv3x3(z, w_ref, bias):                     # z: (C, HW) f32 -> (C, HW) f32
            slabs = []
            for (dy, dx), m in zip(TAPS, masks):
                # want slab[:, i] = z[:, i + dy*W + dx] (zero outside the image)
                shift = (-(dy * W + dx)) % HW
                s = pltpu.roll(z, shift=shift, axis=1) if shift != 0 else z
                if m is not None:
                    s = s * m                            # zero out-of-image taps
                slabs.append(s.astype(jnp.bfloat16))
            patch = jnp.concatenate(slabs, axis=0)       # (9C, HW) bf16 im2col patch
            out = jnp.dot(w_ref[...], patch,             # single MXU matmul, K = 9C
                          preferred_element_type=jnp.float32)
            return out + bias                            # (C, HW) f32

        h = gn_act(x, g1, b1)
        h = conv3x3(h, w1_ref, cb1)
        h = gn_act(h, g2, b2)
        h = conv3x3(h, w2_ref, cb2)
        o_ref[0] = (x + h).astype(o_ref.dtype)           # residual, lane-dense store

    return kernel


def resblock_pallas(x_nchw, params, num_groups):
    (g1, b1, w1, cb1, g2, b2, w2, cb2) = params
    N, C, H, W = x_nchw.shape
    G = num_groups
    assert C % G == 0
    Cg = C // G
    HW = H * W

    # lane-dense NCHW view: (N, C, H*W) -- metadata-only reshape, no transpose.
    x = x_nchw.reshape(N, C, HW).astype(jnp.float32)

    # pack per-channel vectors (+ group id) into a single (C, 8) f32 tile.
    gid = (jnp.arange(C) // Cg).astype(jnp.float32)
    zero = jnp.zeros((C,), jnp.float32)
    vecs = jnp.stack([g1, b1, cb1, g2, b2, cb2, gid, zero], axis=1).astype(jnp.float32)

    # im2col weights: (C_out, 9*C_in), taps ordered (ky, kx) row-major, ci fastest; bf16 in HBM.
    def im2col_w(w_hwio):
        return jnp.transpose(w_hwio, (3, 0, 1, 2)).reshape(C, 9 * C).astype(jnp.bfloat16)
    wt1, wt2 = im2col_w(w1), im2col_w(w2)

    # 0/1 border-validity masks per tap (precomputed -> no int div/mod in-kernel).
    hh = jnp.arange(HW) // W
    ww = jnp.arange(HW) % W
    mask_rows = []
    for dy in (-1, 0, 1):
        for dx in (-1, 0, 1):
            valid = ((hh + dy >= 0) & (hh + dy < H) & (ww + dx >= 0) & (ww + dx < W))
            mask_rows.append(valid.astype(jnp.float32))
    masks = jnp.stack(mask_rows, axis=0)                 # (9, HW)

    kernel = _make_resblock_kernel(H, W, C, G)

    flops = N * 2 * (2 * HW * (9 * C) * C)               # 2 convs, K = 9C
    bytes_accessed = (2 * N * C * HW * 4                 # x in + out
                      + 2 * C * 9 * C * 2                # two bf16 weights
                      + C * 8 * 4 + 9 * HW * 4)          # packed params + masks

    out = pl.pallas_call(
        kernel,
        out_shape=jax.ShapeDtypeStruct((N, C, HW), jnp.float32),
        grid_spec=pltpu.PrefetchScalarGridSpec(
            num_scalar_prefetch=0,
            grid=(N,),
            in_specs=[
                pl.BlockSpec((1, C, HW), lambda n: (n, 0, 0)),   # x (lane-dense)
                pl.BlockSpec((C, 8), lambda n: (0, 0)),          # packed per-channel params
                pl.BlockSpec((9, HW), lambda n: (0, 0)),         # tap border masks
                pl.BlockSpec((C, 9 * C), lambda n: (0, 0)),      # conv1 im2col weight (bf16)
                pl.BlockSpec((C, 9 * C), lambda n: (0, 0)),      # conv2 im2col weight (bf16)
            ],
            out_specs=pl.BlockSpec((1, C, HW), lambda n: (n, 0, 0)),
        ),
        compiler_params=pltpu.CompilerParams(
            dimension_semantics=("parallel",)),
        cost_estimate=pl.CostEstimate(
            flops=int(flops),
            transcendentals=int(2 * N * G),
            bytes_accessed=int(bytes_accessed)),
    )(x, vecs, masks, wt1, wt2)

    return out.reshape(N, C, H, W)


# ---------------- pure-JAX reference (matches PyTorch semantics) -------------
def resblock_ref(x, params, num_groups):
    (g1, b1, w1, cb1, g2, b2, w2, cb2) = params
    N, C, H, W = x.shape
    G = num_groups

    def gn(z, gamma, beta):
        zg = z.reshape(N, G, -1)
        mean = zg.mean(-1, keepdims=True)
        var = zg.var(-1, keepdims=True)  # biased, like nn.GroupNorm
        zn = (zg - mean) / jnp.sqrt(var + EPS)
        zn = zn.reshape(N, C, H, W)
        return zn * gamma.reshape(1, C, 1, 1) + beta.reshape(1, C, 1, 1)

    def act(z):
        return jnp.where(z >= 0, z, NEG_SLOPE * z)

    def conv(z, w, b):
        out = jax.lax.conv_general_dilated(
            z, w, window_strides=(1, 1), padding="SAME",
            dimension_numbers=("NCHW", "HWIO", "NCHW"),
            precision=jax.lax.Precision.HIGHEST)
        return out + b.reshape(1, C, 1, 1)

    h = conv(act(gn(x, g1, b1)), w1, cb1)
    h = conv(act(gn(h, g2, b2)), w2, cb2)
    return x + h


if __name__ == "__main__":
    N, C, H, W = 2, 16, 16, 16
    G = 4  # n_groups (C must be divisible by it, as in nn.GroupNorm)

    key = jax.random.PRNGKey(0)
    ks = jax.random.split(key, 9)
    x = jax.random.normal(ks[0], (N, C, H, W), jnp.float32)

    # deterministic synthetic parameters (conv weights in HWIO layout)
    g1 = 1.0 + 0.1 * jax.random.normal(ks[1], (C,), jnp.float32)
    b1 = 0.1 * jax.random.normal(ks[2], (C,), jnp.float32)
    w1 = 0.1 * jax.random.normal(ks[3], (3, 3, C, C), jnp.float32)
    cb1 = 0.1 * jax.random.normal(ks[4], (C,), jnp.float32)
    g2 = 1.0 + 0.1 * jax.random.normal(ks[5], (C,), jnp.float32)
    b2 = 0.1 * jax.random.normal(ks[6], (C,), jnp.float32)
    w2 = 0.1 * jax.random.normal(ks[7], (3, 3, C, C), jnp.float32)
    cb2 = 0.1 * jax.random.normal(ks[8], (C,), jnp.float32)
    params = (g1, b1, w1, cb1, g2, b2, w2, cb2)

    out = resblock_pallas(x, params, G)
    out = jax.block_until_ready(out)

    ref = resblock_ref(x, params, G)
    assert out.shape == (N, C, H, W)
    # tolerance accounts for bf16 conv operands (f32 accumulation) vs f32 reference
    assert jnp.allclose(out, ref, atol=5e-2, rtol=5e-2), (
        float(jnp.max(jnp.abs(out - ref))))

    print("KERNEL_OK")
</pallas_src>

<mosaic_0001>
module attributes {stable_mosaic.version = 11 : i64} {
  func.func @kernel(%arg0: i32, %arg1: memref<1x16x256xf32, #tpu.memory_space<vmem>>, %arg2: memref<16x8xf32, #tpu.memory_space<vmem>>, %arg3: memref<9x256xf32, #tpu.memory_space<vmem>>, %arg4: memref<16x144xbf16, #tpu.memory_space<vmem>>, %arg5: memref<16x144xbf16, #tpu.memory_space<vmem>>, %arg6: memref<1x16x256xf32, #tpu.memory_space<vmem>>) attributes {dimension_semantics = [#tpu.dimension_semantics<parallel>], iteration_bounds = array<i64: 2>, scalar_prefetch = 0 : i64, scratch_operands = 0 : i64, tpu.core_type = #tpu.core_type<tc>, window_params = [{transform_indices = @transform_0, window_bounds = array<i64: 1, 16, 256>}, {pipeline_mode = #tpu.pipeline_mode<synchronous>, transform_indices = @transform_1, window_bounds = array<i64: 16, 8>}, {pipeline_mode = #tpu.pipeline_mode<synchronous>, transform_indices = @transform_2, window_bounds = array<i64: 9, 256>}, {pipeline_mode = #tpu.pipeline_mode<synchronous>, transform_indices = @transform_3, window_bounds = array<i64: 16, 144>}, {pipeline_mode = #tpu.pipeline_mode<synchronous>, transform_indices = @transform_4, window_bounds = array<i64: 16, 144>}, {transform_indices = @transform_5, window_bounds = array<i64: 1, 16, 256>}]} {
    %c0 = arith.constant 0 : index
    %c0_0 = arith.constant 0 : index
    %c0_1 = arith.constant 0 : index
    %0 = vector.load %arg1[%c0, %c0_0, %c0_1] : memref<1x16x256xf32, #tpu.memory_space<vmem>>, vector<1x16x256xf32>
    %1 = vector.shape_cast %0 : vector<1x16x256xf32> to vector<16x256xf32>
    %c0_2 = arith.constant 0 : index
    %c0_3 = arith.constant 0 : index
    %2 = vector.load %arg2[%c0_2, %c0_3] : memref<16x8xf32, #tpu.memory_space<vmem>>, vector<16x1xf32>
    %c0_4 = arith.constant 0 : index
    %c1 = arith.constant 1 : index
    %3 = vector.load %arg2[%c0_4, %c1] : memref<16x8xf32, #tpu.memory_space<vmem>>, vector<16x1xf32>
    %c0_5 = arith.constant 0 : index
    %c2 = arith.constant 2 : index
    %4 = vector.load %arg2[%c0_5, %c2] : memref<16x8xf32, #tpu.memory_space<vmem>>, vector<16x1xf32>
    %c0_6 = arith.constant 0 : index
    %c3 = arith.constant 3 : index
    %5 = vector.load %arg2[%c0_6, %c3] : memref<16x8xf32, #tpu.memory_space<vmem>>, vector<16x1xf32>
    %c0_7 = arith.constant 0 : index
    %c4 = arith.constant 4 : index
    %6 = vector.load %arg2[%c0_7, %c4] : memref<16x8xf32, #tpu.memory_space<vmem>>, vector<16x1xf32>
    %c0_8 = arith.constant 0 : index
    %c5 = arith.constant 5 : index
    %7 = vector.load %arg2[%c0_8, %c5] : memref<16x8xf32, #tpu.memory_space<vmem>>, vector<16x1xf32>
    %c0_9 = arith.constant 0 : index
    %c6 = arith.constant 6 : index
    %8 = vector.load %arg2[%c0_9, %c6] : memref<16x8xf32, #tpu.memory_space<vmem>>, vector<16x1xf32>
    %c0_10 = arith.constant 0 : index
    %c0_11 = arith.constant 0 : index
    %9 = vector.load %arg3[%c0_10, %c0_11] : memref<9x256xf32, #tpu.memory_space<vmem>>, vector<1x256xf32>
    %c1_12 = arith.constant 1 : index
    %c0_13 = arith.constant 0 : index
    %10 = vector.load %arg3[%c1_12, %c0_13] : memref<9x256xf32, #tpu.memory_space<vmem>>, vector<1x256xf32>
    %c2_14 = arith.constant 2 : index
    %c0_15 = arith.constant 0 : index
    %11 = vector.load %arg3[%c2_14, %c0_15] : memref<9x256xf32, #tpu.memory_space<vmem>>, vector<1x256xf32>
    %c3_16 = arith.constant 3 : index
    %c0_17 = arith.constant 0 : index
    %12 = vector.load %arg3[%c3_16, %c0_17] : memref<9x256xf32, #tpu.memory_space<vmem>>, vector<1x256xf32>
    %c5_18 = arith.constant 5 : index
    %c0_19 = arith.constant 0 : index
    %13 = vector.load %arg3[%c5_18, %c0_19] : memref<9x256xf32, #tpu.memory_space<vmem>>, vector<1x256xf32>
    %c6_20 = arith.constant 6 : index
    %c0_21 = arith.constant 0 : index
    %14 = vector.load %arg3[%c6_20, %c0_21] : memref<9x256xf32, #tpu.memory_space<vmem>>, vector<1x256xf32>
    %c7 = arith.constant 7 : index
    %c0_22 = arith.constant 0 : index
    %15 = vector.load %arg3[%c7, %c0_22] : memref<9x256xf32, #tpu.memory_space<vmem>>, vector<1x256xf32>
    %c8 = arith.constant 8 : index
    %c0_23 = arith.constant 0 : index
    %16 = vector.load %arg3[%c8, %c0_23] : memref<9x256xf32, #tpu.memory_space<vmem>>, vector<1x256xf32>
    %cst = arith.constant dense<0.000000e+00> : vector<16xf32>
    %17 = vector.multi_reduction <add>, %1, %cst [1] : vector<16x256xf32> to vector<16xf32>
    %18 = vector.shape_cast %17 : vector<16xf32> to vector<16x1xf32>
    %cst_24 = arith.constant 0.000000e+00 : f32
    %19 = vector.broadcast %cst_24 : f32 to vector<16x1xf32>
    %20 = vector.extract_strided_slice %18 {offsets = [0, 0], sizes = [4, 1], strides = [1, 1]} : vector<16x1xf32> to vector<4x1xf32>
    %cst_25 = arith.constant dense<0.000000e+00> : vector<1xf32>
    %21 = vector.multi_reduction <add>, %20, %cst_25 [0] : vector<4x1xf32> to vector<1xf32>
    %22 = vector.shape_cast %21 : vector<1xf32> to vector<1x1xf32>
    %cst_26 = arith.constant 0.000000e+00 : f32
    %23 = vector.broadcast %cst_26 : f32 to vector<16x1xf32>
    %24 = arith.cmpf oeq, %8, %23 : vector<16x1xf32>
    %25 = vector.shape_cast %22 : vector<1x1xf32> to vector<1x1xf32>
    %26 = vector.broadcast %25 : vector<1x1xf32> to vector<16x1xf32>
    %27 = arith.select %24, %26, %19 : vector<16x1xi1>, vector<16x1xf32>
    %28 = vector.extract_strided_slice %18 {offsets = [4, 0], sizes = [4, 1], strides = [1, 1]} : vector<16x1xf32> to vector<4x1xf32>
    %cst_27 = arith.constant dense<0.000000e+00> : vector<1xf32>
    %29 = vector.multi_reduction <add>, %28, %cst_27 [0] : vector<4x1xf32> to vector<1xf32>
    %30 = vector.shape_cast %29 : vector<1xf32> to vector<1x1xf32>
    %cst_28 = arith.constant 1.000000e+00 : f32
    %31 = vector.broadcast %cst_28 : f32 to vector<16x1xf32>
    %32 = arith.cmpf oeq, %8, %31 : vector<16x1xf32>
    %33 = vector.shape_cast %30 : vector<1x1xf32> to vector<1x1xf32>
    %34 = vector.broadcast %33 : vector<1x1xf32> to vector<16x1xf32>
    %35 = arith.select %32, %34, %27 : vector<16x1xi1>, vector<16x1xf32>
    %36 = vector.extract_strided_slice %18 {offsets = [8, 0], sizes = [4, 1], strides = [1, 1]} : vector<16x1xf32> to vector<4x1xf32>
    %cst_29 = arith.constant dense<0.000000e+00> : vector<1xf32>
    %37 = vector.multi_reduction <add>, %36, %cst_29 [0] : vector<4x1xf32> to vector<1xf32>
    %38 = vector.shape_cast %37 : vector<1xf32> to vector<1x1xf32>
    %cst_30 = arith.constant 2.000000e+00 : f32
    %39 = vector.broadcast %cst_30 : f32 to vector<16x1xf32>
    %40 = arith.cmpf oeq, %8, %39 : vector<16x1xf32>
    %41 = vector.shape_cast %38 : vector<1x1xf32> to vector<1x1xf32>
    %42 = vector.broadcast %41 : vector<1x1xf32> to vector<16x1xf32>
    %43 = arith.select %40, %42, %35 : vector<16x1xi1>, vector<16x1xf32>
    %44 = vector.extract_strided_slice %18 {offsets = [12, 0], sizes = [4, 1], strides = [1, 1]} : vector<16x1xf32> to vector<4x1xf32>
    %cst_31 = arith.constant dense<0.000000e+00> : vector<1xf32>
    %45 = vector.multi_reduction <add>, %44, %cst_31 [0] : vector<4x1xf32> to vector<1xf32>
    %46 = vector.shape_cast %45 : vector<1xf32> to vector<1x1xf32>
    %cst_32 = arith.constant 3.000000e+00 : f32
    %47 = vector.broadcast %cst_32 : f32 to vector<16x1xf32>
    %48 = arith.cmpf oeq, %8, %47 : vector<16x1xf32>
    %49 = vector.shape_cast %46 : vector<1x1xf32> to vector<1x1xf32>
    %50 = vector.broadcast %49 : vector<1x1xf32> to vector<16x1xf32>
    %51 = arith.select %48, %50, %43 : vector<16x1xi1>, vector<16x1xf32>
    %cst_33 = arith.constant 9.765625E-4 : f32
    %52 = vector.broadcast %cst_33 : f32 to vector<16x1xf32>
    %53 = arith.mulf %51, %52 : vector<16x1xf32>
    %54 = vector.broadcast %53 : vector<16x1xf32> to vector<16x256xf32>
    %55 = arith.subf %1, %54 : vector<16x256xf32>
    %56 = arith.mulf %55, %55 : vector<16x256xf32>
    %cst_34 = arith.constant dense<0.000000e+00> : vector<16xf32>
    %57 = vector.multi_reduction <add>, %56, %cst_34 [1] : vector<16x256xf32> to vector<16xf32>
    %58 = vector.shape_cast %57 : vector<16xf32> to vector<16x1xf32>
    %cst_35 = arith.constant 0.000000e+00 : f32
    %59 = vector.broadcast %cst_35 : f32 to vector<16x1xf32>
    %60 = vector.extract_strided_slice %58 {offsets = [0, 0], sizes = [4, 1], strides = [1, 1]} : vector<16x1xf32> to vector<4x1xf32>
    %cst_36 = arith.constant dense<0.000000e+00> : vector<1xf32>
    %61 = vector.multi_reduction <add>, %60, %cst_36 [0] : vector<4x1xf32> to vector<1xf32>
    %62 = vector.shape_cast %61 : vector<1xf32> to vector<1x1xf32>
    %cst_37 = arith.constant 0.000000e+00 : f32
    %63 = vector.broadcast %cst_37 : f32 to vector<16x1xf32>
    %64 = arith.cmpf oeq, %8, %63 : vector<16x1xf32>
    %65 = vector.shape_cast %62 : vector<1x1xf32> to vector<1x1xf32>
    %66 = vector.broadcast %65 : vector<1x1xf32> to vector<16x1xf32>
    %67 = arith.select %64, %66, %59 : vector<16x1xi1>, vector<16x1xf32>
    %68 = vector.extract_strided_slice %58 {offsets = [4, 0], sizes = [4, 1], strides = [1, 1]} : vector<16x1xf32> to vector<4x1xf32>
    %cst_38 = arith.constant dense<0.000000e+00> : vector<1xf32>
    %69 = vector.multi_reduction <add>, %68, %cst_38 [0] : vector<4x1xf32> to vector<1xf32>
    %70 = vector.shape_cast %69 : vector<1xf32> to vector<1x1xf32>
    %cst_39 = arith.constant 1.000000e+00 : f32
    %71 = vector.broadcast %cst_39 : f32 to vector<16x1xf32>
    %72 = arith.cmpf oeq, %8, %71 : vector<16x1xf32>
    %73 = vector.shape_cast %70 : vector<1x1xf32> to vector<1x1xf32>
    %74 = vector.broadcast %73 : vector<1x1xf32> to vector<16x1xf32>
    %75 = arith.select %72, %74, %67 : vector<16x1xi1>, vector<16x1xf32>
    %76 = vector.extract_strided_slice %58 {offsets = [8, 0], sizes = [4, 1], strides = [1, 1]} : vector<16x1xf32> to vector<4x1xf32>
    %cst_40 = arith.constant dense<0.000000e+00> : vector<1xf32>
    %77 = vector.multi_reduction <add>, %76, %cst_40 [0] : vector<4x1xf32> to vector<1xf32>
    %78 = vector.shape_cast %77 : vector<1xf32> to vector<1x1xf32>
    %cst_41 = arith.constant 2.000000e+00 : f32
    %79 = vector.broadcast %cst_41 : f32 to vector<16x1xf32>
    %80 = arith.cmpf oeq, %8, %79 : vector<16x1xf32>
    %81 = vector.shape_cast %78 : vector<1x1xf32> to vector<1x1xf32>
    %82 = vector.broadcast %81 : vector<1x1xf32> to vector<16x1xf32>
    %83 = arith.select %80, %82, %75 : vector<16x1xi1>, vector<16x1xf32>
    %84 = vector.extract_strided_slice %58 {offsets = [12, 0], sizes = [4, 1], strides = [1, 1]} : vector<16x1xf32> to vector<4x1xf32>
    %cst_42 = arith.constant dense<0.000000e+00> : vector<1xf32>
    %85 = vector.multi_reduction <add>, %84, %cst_42 [0] : vector<4x1xf32> to vector<1xf32>
    %86 = vector.shape_cast %85 : vector<1xf32> to vector<1x1xf32>
    %cst_43 = arith.constant 3.000000e+00 : f32
    %87 = vector.broadcast %cst_43 : f32 to vector<16x1xf32>
    %88 = arith.cmpf oeq, %8, %87 : vector<16x1xf32>
    %89 = vector.shape_cast %86 : vector<1x1xf32> to vector<1x1xf32>
    %90 = vector.broadcast %89 : vector<1x1xf32> to vector<16x1xf32>
    %91 = arith.select %88, %90, %83 : vector<16x1xi1>, vector<16x1xf32>
    %cst_44 = arith.constant 9.765625E-4 : f32
    %92 = vector.broadcast %cst_44 : f32 to vector<16x1xf32>
    %93 = arith.mulf %91, %92 : vector<16x1xf32>
    %cst_45 = arith.constant 9.99999974E-6 : f32
    %94 = vector.broadcast %cst_45 : f32 to vector<16x1xf32>
    %95 = arith.addf %93, %94 : vector<16x1xf32>
    %96 = math.rsqrt %95 : vector<16x1xf32>
    %97 = arith.mulf %2, %96 : vector<16x1xf32>
    %98 = vector.broadcast %97 : vector<16x1xf32> to vector<16x256xf32>
    %99 = arith.mulf %55, %98 : vector<16x256xf32>
    %100 = vector.broadcast %3 : vector<16x1xf32> to vector<16x256xf32>
    %101 = arith.addf %99, %100 : vector<16x256xf32>
    %cst_46 = arith.constant 0.000000e+00 : f32
    %102 = vector.broadcast %cst_46 : f32 to vector<16x256xf32>
    %103 = arith.cmpf oge, %101, %102 : vector<16x256xf32>
    %cst_47 = arith.constant 2.000000e-01 : f32
    %104 = vector.broadcast %cst_47 : f32 to vector<16x256xf32>
    %105 = arith.mulf %104, %101 : vector<16x256xf32>
    %106 = arith.select %103, %101, %105 : vector<16x256xi1>, vector<16x256xf32>
    %c17_i32 = arith.constant 17 : i32
    %107 = tpu.dynamic_rotate %106 by %c17_i32 dim 1 : vector<16x256xf32>, i32 -> vector<16x256xf32>
    %108 = vector.broadcast %9 : vector<1x256xf32> to vector<16x256xf32>
    %109 = arith.mulf %107, %108 : vector<16x256xf32>
    %110 = arith.truncf %109 : vector<16x256xf32> to vector<16x256xbf16>
    %c16_i32 = arith.constant 16 : i32
    %111 = tpu.dynamic_rotate %106 by %c16_i32 dim 1 : vector<16x256xf32>, i32 -> vector<16x256xf32>
    %112 = vector.broadcast %10 : vector<1x256xf32> to vector<16x256xf32>
    %113 = arith.mulf %111, %112 : vector<16x256xf32>
    %114 = arith.truncf %113 : vector<16x256xf32> to vector<16x256xbf16>
    %c15_i32 = arith.constant 15 : i32
    %115 = tpu.dynamic_rotate %106 by %c15_i32 dim 1 : vector<16x256xf32>, i32 -> vector<16x256xf32>
    %116 = vector.broadcast %11 : vector<1x256xf32> to vector<16x256xf32>
    %117 = arith.mulf %115, %116 : vector<16x256xf32>
    %118 = arith.truncf %117 : vector<16x256xf32> to vector<16x256xbf16>
    %c1_i32 = arith.constant 1 : i32
    %119 = tpu.dynamic_rotate %106 by %c1_i32 dim 1 : vector<16x256xf32>, i32 -> vector<16x256xf32>
    %120 = vector.broadcast %12 : vector<1x256xf32> to vector<16x256xf32>
    %121 = arith.mulf %119, %120 : vector<16x256xf32>
    %122 = arith.truncf %121 : vector<16x256xf32> to vector<16x256xbf16>
    %123 = arith.truncf %106 : vector<16x256xf32> to vector<16x256xbf16>
    %c255_i32 = arith.constant 255 : i32
    %124 = tpu.dynamic_rotate %106 by %c255_i32 dim 1 : vector<16x256xf32>, i32 -> vector<16x256xf32>
    %125 = vector.broadcast %13 : vector<1x256xf32> to vector<16x256xf32>
    %126 = arith.mulf %124, %125 : vector<16x256xf32>
    %127 = arith.truncf %126 : vector<16x256xf32> to vector<16x256xbf16>
    %c241_i32 = arith.constant 241 : i32
    %128 = tpu.dynamic_rotate %106 by %c241_i32 dim 1 : vector<16x256xf32>, i32 -> vector<16x256xf32>
    %129 = vector.broadcast %14 : vector<1x256xf32> to vector<16x256xf32>
    %130 = arith.mulf %128, %129 : vector<16x256xf32>
    %131 = arith.truncf %130 : vector<16x256xf32> to vector<16x256xbf16>
    %c240_i32 = arith.constant 240 : i32
    %132 = tpu.dynamic_rotate %106 by %c240_i32 dim 1 : vector<16x256xf32>, i32 -> vector<16x256xf32>
    %133 = vector.broadcast %15 : vector<1x256xf32> to vector<16x256xf32>
    %134 = arith.mulf %132, %133 : vector<16x256xf32>
    %135 = arith.truncf %134 : vector<16x256xf32> to vector<16x256xbf16>
    %c239_i32 = arith.constant 239 : i32
    %136 = tpu.dynamic_rotate %106 by %c239_i32 dim 1 : vector<16x256xf32>, i32 -> vector<16x256xf32>
    %137 = vector.broadcast %16 : vector<1x256xf32> to vector<16x256xf32>
    %138 = arith.mulf %136, %137 : vector<16x256xf32>
    %139 = arith.truncf %138 : vector<16x256xf32> to vector<16x256xbf16>
    %140 = tpu.concatenate %110, %114, %118, %122, %123, %127, %131, %135, %139 in 0 : vector<16x256xbf16>, vector<16x256xbf16>, vector<16x256xbf16>, vector<16x256xbf16>, vector<16x256xbf16>, vector<16x256xbf16>, vector<16x256xbf16>, vector<16x256xbf16>, vector<16x256xbf16> -> vector<144x256xbf16>
    %c0_48 = arith.constant 0 : index
    %c0_49 = arith.constant 0 : index
    %141 = vector.load %arg4[%c0_48, %c0_49] : memref<16x144xbf16, #tpu.memory_space<vmem>>, vector<16x144xbf16>
    %cst_50 = arith.constant dense<0.000000e+00> : vector<16x256xf32>
    %142 = tpu.matmul %141, %140, %cst_50 {dimension_numbers = #tpu.dot_dimension_numbers<[1], [0], [0], [1], [0, 0, 1, 1], [], []>} : vector<16x144xbf16>, vector<144x256xbf16>, vector<16x256xf32> -> vector<16x256xf32>
    %143 = vector.broadcast %4 : vector<16x1xf32> to vector<16x256xf32>
    %144 = arith.addf %142, %143 : vector<16x256xf32>
    %cst_51 = arith.constant dense<0.000000e+00> : vector<16xf32>
    %145 = vector.multi_reduction <add>, %144, %cst_51 [1] : vector<16x256xf32> to vector<16xf32>
    %146 = vector.shape_cast %145 : vector<16xf32> to vector<16x1xf32>
    %cst_52 = arith.constant 0.000000e+00 : f32
    %147 = vector.broadcast %cst_52 : f32 to vector<16x1xf32>
    %148 = vector.extract_strided_slice %146 {offsets = [0, 0], sizes = [4, 1], strides = [1, 1]} : vector<16x1xf32> to vector<4x1xf32>
    %cst_53 = arith.constant dense<0.000000e+00> : vector<1xf32>
    %149 = vector.multi_reduction <add>, %148, %cst_53 [0] : vector<4x1xf32> to vector<1xf32>
    %150 = vector.shape_cast %149 : vector<1xf32> to vector<1x1xf32>
    %cst_54 = arith.constant 0.000000e+00 : f32
    %151 = vector.broadcast %cst_54 : f32 to vector<16x1xf32>
    %152 = arith.cmpf oeq, %8, %151 : vector<16x1xf32>
    %153 = vector.shape_cast %150 : vector<1x1xf32> to vector<1x1xf32>
    %154 = vector.broadcast %153 : vector<1x1xf32> to vector<16x1xf32>
    %155 = arith.select %152, %154, %147 : vector<16x1xi1>, vector<16x1xf32>
    %156 = vector.extract_strided_slice %146 {offsets = [4, 0], sizes = [4, 1], strides = [1, 1]} : vector<16x1xf32> to vector<4x1xf32>
    %cst_55 = arith.constant dense<0.000000e+00> : vector<1xf32>
    %157 = vector.multi_reduction <add>, %156, %cst_55 [0] : vector<4x1xf32> to vector<1xf32>
    %158 = vector.shape_cast %157 : vector<1xf32> to vector<1x1xf32>
    %cst_56 = arith.constant 1.000000e+00 : f32
    %159 = vector.broadcast %cst_56 : f32 to vector<16x1xf32>
    %160 = arith.cmpf oeq, %8, %159 : vector<16x1xf32>
    %161 = vector.shape_cast %158 : vector<1x1xf32> to vector<1x1xf32>
    %162 = vector.broadcast %161 : vector<1x1xf32> to vector<16x1xf32>
    %163 = arith.select %160, %162, %155 : vector<16x1xi1>, vector<16x1xf32>
    %164 = vector.extract_strided_slice %146 {offsets = [8, 0], sizes = [4, 1], strides = [1, 1]} : vector<16x1xf32> to vector<4x1xf32>
    %cst_57 = arith.constant dense<0.000000e+00> : vector<1xf32>
    %165 = vector.multi_reduction <add>, %164, %cst_57 [0] : vector<4x1xf32> to vector<1xf32>
    %166 = vector.shape_cast %165 : vector<1xf32> to vector<1x1xf32>
    %cst_58 = arith.constant 2.000000e+00 : f32
    %167 = vector.broadcast %cst_58 : f32 to vector<16x1xf32>
    %168 = arith.cmpf oeq, %8, %167 : vector<16x1xf32>
    %169 = vector.shape_cast %166 : vector<1x1xf32> to vector<1x1xf32>
    %170 = vector.broadcast %169 : vector<1x1xf32> to vector<16x1xf32>
    %171 = arith.select %168, %170, %163 : vector<16x1xi1>, vector<16x1xf32>
    %172 = vector.extract_strided_slice %146 {offsets = [12, 0], sizes = [4, 1], strides = [1, 1]} : vector<16x1xf32> to vector<4x1xf32>
    %cst_59 = arith.constant dense<0.000000e+00> : vector<1xf32>
    %173 = vector.multi_reduction <add>, %172, %cst_59 [0] : vector<4x1xf32> to vector<1xf32>
    %174 = vector.shape_cast %173 : vector<1xf32> to vector<1x1xf32>
    %cst_60 = arith.constant 3.000000e+00 : f32
    %175 = vector.broadcast %cst_60 : f32 to vector<16x1xf32>
    %176 = arith.cmpf oeq, %8, %175 : vector<16x1xf32>
    %177 = vector.shape_cast %174 : vector<1x1xf32> to vector<1x1xf32>
    %178 = vector.broadcast %177 : vector<1x1xf32> to vector<16x1xf32>
    %179 = arith.select %176, %178, %171 : vector<16x1xi1>, vector<16x1xf32>
    %cst_61 = arith.constant 9.765625E-4 : f32
    %180 = vector.broadcast %cst_61 : f32 to vector<16x1xf32>
    %181 = arith.mulf %179, %180 : vector<16x1xf32>
    %182 = vector.broadcast %181 : vector<16x1xf32> to vector<16x256xf32>
    %183 = arith.subf %144, %182 : vector<16x256xf32>
    %184 = arith.mulf %183, %183 : vector<16x256xf32>
    %cst_62 = arith.constant dense<0.000000e+00> : vector<16xf32>
    %185 = vector.multi_reduction <add>, %184, %cst_62 [1] : vector<16x256xf32> to vector<16xf32>
    %186 = vector.shape_cast %185 : vector<16xf32> to vector<16x1xf32>
    %cst_63 = arith.constant 0.000000e+00 : f32
    %187 = vector.broadcast %cst_63 : f32 to vector<16x1xf32>
    %188 = vector.extract_strided_slice %186 {offsets = [0, 0], sizes = [4, 1], strides = [1, 1]} : vector<16x1xf32> to vector<4x1xf32>
    %cst_64 = arith.constant dense<0.000000e+00> : vector<1xf32>
    %189 = vector.multi_reduction <add>, %188, %cst_64 [0] : vector<4x1xf32> to vector<1xf32>
    %190 = vector.shape_cast %189 : vector<1xf32> to vector<1x1xf32>
    %cst_65 = arith.constant 0.000000e+00 : f32
    %191 = vector.broadcast %cst_65 : f32 to vector<16x1xf32>
    %192 = arith.cmpf oeq, %8, %191 : vector<16x1xf32>
    %193 = vector.shape_cast %190 : vector<1x1xf32> to vector<1x1xf32>
    %194 = vector.broadcast %193 : vector<1x1xf32> to vector<16x1xf32>
    %195 = arith.select %192, %194, %187 : vector<16x1xi1>, vector<16x1xf32>
    %196 = vector.extract_strided_slice %186 {offsets = [4, 0], sizes = [4, 1], strides = [1, 1]} : vector<16x1xf32> to vector<4x1xf32>
    %cst_66 = arith.constant dense<0.000000e+00> : vector<1xf32>
    %197 = vector.multi_reduction <add>, %196, %cst_66 [0] : vector<4x1xf32> to vector<1xf32>
    %198 = vector.shape_cast %197 : vector<1xf32> to vector<1x1xf32>
    %cst_67 = arith.constant 1.000000e+00 : f32
    %199 = vector.broadcast %cst_67 : f32 to vector<16x1xf32>
    %200 = arith.cmpf oeq, %8, %199 : vector<16x1xf32>
    %201 = vector.shape_cast %198 : vector<1x1xf32> to vector<1x1xf32>
    %202 = vector.broadcast %201 : vector<1x1xf32> to vector<16x1xf32>
    %203 = arith.select %200, %202, %195 : vector<16x1xi1>, vector<16x1xf32>
    %204 = vector.extract_strided_slice %186 {offsets = [8, 0], sizes = [4, 1], strides = [1, 1]} : vector<16x1xf32> to vector<4x1xf32>
    %cst_68 = arith.constant dense<0.000000e+00> : vector<1xf32>
    %205 = vector.multi_reduction <add>, %204, %cst_68 [0] : vector<4x1xf32> to vector<1xf32>
    %206 = vector.shape_cast %205 : vector<1xf32> to vector<1x1xf32>
    %cst_69 = arith.constant 2.000000e+00 : f32
    %207 = vector.broadcast %cst_69 : f32 to vector<16x1xf32>
    %208 = arith.cmpf oeq, %8, %207 : vector<16x1xf32>
    %209 = vector.shape_cast %206 : vector<1x1xf32> to vector<1x1xf32>
    %210 = vector.broadcast %209 : vector<1x1xf32> to vector<16x1xf32>
    %211 = arith.select %208, %210, %203 : vector<16x1xi1>, vector<16x1xf32>
    %212 = vector.extract_strided_slice %186 {offsets = [12, 0], sizes = [4, 1], strides = [1, 1]} : vector<16x1xf32> to vector<4x1xf32>
    %cst_70 = arith.constant dense<0.000000e+00> : vector<1xf32>
    %213 = vector.multi_reduction <add>, %212, %cst_70 [0] : vector<4x1xf32> to vector<1xf32>
    %214 = vector.shape_cast %213 : vector<1xf32> to vector<1x1xf32>
    %cst_71 = arith.constant 3.000000e+00 : f32
    %215 = vector.broadcast %cst_71 : f32 to vector<16x1xf32>
    %216 = arith.cmpf oeq, %8, %215 : vector<16x1xf32>
    %217 = vector.shape_cast %214 : vector<1x1xf32> to vector<1x1xf32>
    %218 = vector.broadcast %217 : vector<1x1xf32> to vector<16x1xf32>
    %219 = arith.select %216, %218, %211 : vector<16x1xi1>, vector<16x1xf32>
    %cst_72 = arith.constant 9.765625E-4 : f32
    %220 = vector.broadcast %cst_72 : f32 to vector<16x1xf32>
    %221 = arith.mulf %219, %220 : vector<16x1xf32>
    %cst_73 = arith.constant 9.99999974E-6 : f32
    %222 = vector.broadcast %cst_73 : f32 to vector<16x1xf32>
    %223 = arith.addf %221, %222 : vector<16x1xf32>
    %224 = math.rsqrt %223 : vector<16x1xf32>
    %225 = arith.mulf %5, %224 : vector<16x1xf32>
    %226 = vector.broadcast %225 : vector<16x1xf32> to vector<16x256xf32>
    %227 = arith.mulf %183, %226 : vector<16x256xf32>
    %228 = vector.broadcast %6 : vector<16x1xf32> to vector<16x256xf32>
    %229 = arith.addf %227, %228 : vector<16x256xf32>
    %cst_74 = arith.constant 0.000000e+00 : f32
    %230 = vector.broadcast %cst_74 : f32 to vector<16x256xf32>
    %231 = arith.cmpf oge, %229, %230 : vector<16x256xf32>
    %cst_75 = arith.constant 2.000000e-01 : f32
    %232 = vector.broadcast %cst_75 : f32 to vector<16x256xf32>
    %233 = arith.mulf %232, %229 : vector<16x256xf32>
    %234 = arith.select %231, %229, %233 : vector<16x256xi1>, vector<16x256xf32>
    %c17_i32_76 = arith.constant 17 : i32
    %235 = tpu.dynamic_rotate %234 by %c17_i32_76 dim 1 : vector<16x256xf32>, i32 -> vector<16x256xf32>
    %236 = vector.broadcast %9 : vector<1x256xf32> to vector<16x256xf32>
    %237 = arith.mulf %235, %236 : vector<16x256xf32>
    %238 = arith.truncf %237 : vector<16x256xf32> to vector<16x256xbf16>
    %c16_i32_77 = arith.constant 16 : i32
    %239 = tpu.dynamic_rotate %234 by %c16_i32_77 dim 1 : vector<16x256xf32>, i32 -> vector<16x256xf32>
    %240 = vector.broadcast %10 : vector<1x256xf32> to vector<16x256xf32>
    %241 = arith.mulf %239, %240 : vector<16x256xf32>
    %242 = arith.truncf %241 : vector<16x256xf32> to vector<16x256xbf16>
    %c15_i32_78 = arith.constant 15 : i32
    %243 = tpu.dynamic_rotate %234 by %c15_i32_78 dim 1 : vector<16x256xf32>, i32 -> vector<16x256xf32>
    %244 = vector.broadcast %11 : vector<1x256xf32> to vector<16x256xf32>
    %245 = arith.mulf %243, %244 : vector<16x256xf32>
    %246 = arith.truncf %245 : vector<16x256xf32> to vector<16x256xbf16>
    %c1_i32_79 = arith.constant 1 : i32
    %247 = tpu.dynamic_rotate %234 by %c1_i32_79 dim 1 : vector<16x256xf32>, i32 -> vector<16x256xf32>
    %248 = vector.broadcast %12 : vector<1x256xf32> to vector<16x256xf32>
    %249 = arith.mulf %247, %248 : vector<16x256xf32>
    %250 = arith.truncf %249 : vector<16x256xf32> to vector<16x256xbf16>
    %251 = arith.truncf %234 : vector<16x256xf32> to vector<16x256xbf16>
    %c255_i32_80 = arith.constant 255 : i32
    %252 = tpu.dynamic_rotate %234 by %c255_i32_80 dim 1 : vector<16x256xf32>, i32 -> vector<16x256xf32>
    %253 = vector.broadcast %13 : vector<1x256xf32> to vector<16x256xf32>
    %254 = arith.mulf %252, %253 : vector<16x256xf32>
    %255 = arith.truncf %254 : vector<16x256xf32> to vector<16x256xbf16>
    %c241_i32_81 = arith.constant 241 : i32
    %256 = tpu.dynamic_rotate %234 by %c241_i32_81 dim 1 : vector<16x256xf32>, i32 -> vector<16x256xf32>
    %257 = vector.broadcast %14 : vector<1x256xf32> to vector<16x256xf32>
    %258 = arith.mulf %256, %257 : vector<16x256xf32>
    %259 = arith.truncf %258 : vector<16x256xf32> to vector<16x256xbf16>
    %c240_i32_82 = arith.constant 240 : i32
    %260 = tpu.dynamic_rotate %234 by %c240_i32_82 dim 1 : vector<16x256xf32>, i32 -> vector<16x256xf32>
    %261 = vector.broadcast %15 : vector<1x256xf32> to vector<16x256xf32>
    %262 = arith.mulf %260, %261 : vector<16x256xf32>
    %263 = arith.truncf %262 : vector<16x256xf32> to vector<16x256xbf16>
    %c239_i32_83 = arith.constant 239 : i32
    %264 = tpu.dynamic_rotate %234 by %c239_i32_83 dim 1 : vector<16x256xf32>, i32 -> vector<16x256xf32>
    %265 = vector.broadcast %16 : vector<1x256xf32> to vector<16x256xf32>
    %266 = arith.mulf %264, %265 : vector<16x256xf32>
    %267 = arith.truncf %266 : vector<16x256xf32> to vector<16x256xbf16>
    %268 = tpu.concatenate %238, %242, %246, %250, %251, %255, %259, %263, %267 in 0 : vector<16x256xbf16>, vector<16x256xbf16>, vector<16x256xbf16>, vector<16x256xbf16>, vector<16x256xbf16>, vector<16x256xbf16>, vector<16x256xbf16>, vector<16x256xbf16>, vector<16x256xbf16> -> vector<144x256xbf16>
    %c0_84 = arith.constant 0 : index
    %c0_85 = arith.constant 0 : index
    %269 = vector.load %arg5[%c0_84, %c0_85] : memref<16x144xbf16, #tpu.memory_space<vmem>>, vector<16x144xbf16>
    %cst_86 = arith.constant dense<0.000000e+00> : vector<16x256xf32>
    %270 = tpu.matmul %269, %268, %cst_86 {dimension_numbers = #tpu.dot_dimension_numbers<[1], [0], [0], [1], [0, 0, 1, 1], [], []>} : vector<16x144xbf16>, vector<144x256xbf16>, vector<16x256xf32> -> vector<16x256xf32>
    %271 = vector.broadcast %7 : vector<16x1xf32> to vector<16x256xf32>
    %272 = arith.addf %270, %271 : vector<16x256xf32>
    %273 = arith.addf %1, %272 : vector<16x256xf32>
    %c0_87 = arith.constant 0 : index
    %c0_88 = arith.constant 0 : index
    %c0_89 = arith.constant 0 : index
    %274 = vector.load %arg6[%c0_87, %c0_88, %c0_89] : memref<1x16x256xf32, #tpu.memory_space<vmem>>, vector<1x16x256xf32>
    %275 = vector.shape_cast %274 : vector<1x16x256xf32> to vector<16x256xf32>
    %276 = vector.shape_cast %273 : vector<16x256xf32> to vector<1x16x256xf32>
    tpu.vector_store %arg6[%c0_87, %c0_88, %c0_89], %276 {strides = array<i32>} : memref<1x16x256xf32, #tpu.memory_space<vmem>>, vector<1x16x256xf32>,
    return
  }
  func.func @transform_0(%arg0: i32) -> (i32, i32, i32) {
    %c0_i32 = arith.constant 0 : i32
    %c0_i32_0 = arith.constant 0 : i32
    %c0_i32_1 = arith.constant 0 : i32
    return %arg0, %c0_i32, %c0_i32_0 : i32, i32, i32
  }
  func.func @transform_1(%arg0: i32) -> (i32, i32) {
    %c0_i32 = arith.constant 0 : i32
    %c0_i32_0 = arith.constant 0 : i32
    %c0_i32_1 = arith.constant 0 : i32
    return %c0_i32, %c0_i32_0 : i32, i32
  }
  func.func @transform_2(%arg0: i32) -> (i32, i32) {
    %c0_i32 = arith.constant 0 : i32
    %c0_i32_0 = arith.constant 0 : i32
    %c0_i32_1 = arith.constant 0 : i32
    return %c0_i32, %c0_i32_0 : i32, i32
  }
  func.func @transform_3(%arg0: i32) -> (i32, i32) {
    %c0_i32 = arith.constant 0 : i32
    %c0_i32_0 = arith.constant 0 : i32
    %c0_i32_1 = arith.constant 0 : i32
    return %c0_i32, %c0_i32_0 : i32, i32
  }
  func.func @transform_4(%arg0: i32) -> (i32, i32) {
    %c0_i32 = arith.constant 0 : i32
    %c0_i32_0 = arith.constant 0 : i32
    %c0_i32_1 = arith.constant 0 : i32
    return %c0_i32, %c0_i32_0 : i32, i32
  }
  func.func @transform_5(%arg0: i32) -> (i32, i32, i32) {
    %c0_i32 = arith.constant 0 : i32
    %c0_i32_0 = arith.constant 0 : i32
    %c0_i32_1 = arith.constant 0 : i32
    return %arg0, %c0_i32, %c0_i32_0 : i32, i32, i32
  }
}

</mosaic_0001>

<llo_original>
// kernel: tpu_custom_call.1
$region0: #{tpu_custom_call.1}
  #allocation0 [shape = 'u32[]', space=smem, size = 0x4, offset = 0x4, fixed_abs, tag = 'smem constant byte address 0x4 - core index']
  #allocation1 [shape = 'u32[144,128]{1,0:T(1,128)}', space=vmem, size = 0x12000, scoped, tag = 'internal scratch']
  %s0 = inlined_call_operand.hbm [shape: f32[2,16,256], index: 0, kind: input, shape index: {}]
  %s1 = inlined_call_operand.vmem [shape: f32[16,8], index: 1, kind: input, shape index: {}]
  %s2 = inlined_call_operand.hbm [shape: f32[9,256], index: 2, kind: input, shape index: {}]
  %s3 = inlined_call_operand.vmem [shape: bf16[16,144], index: 3, kind: input, shape index: {}]
  %s4 = inlined_call_operand.vmem [shape: bf16[16,144], index: 4, kind: input, shape index: {}]
  %s5 = inlined_call_operand.hbm [shape: f32[2,16,256], index: 5, kind: output, shape index: {}]
  %s6 = sld [smem:[#allocation0]]
  $region61: #{tpu_custom_call.1} parent=0
    _
  %s8 = ssub.s32 1, %s6
  %s9 = scalar_select 0, %s8, %s6
  $region1: #{tpu_custom_call.1} parent=0
    #allocation2 [shape = 'u8[32768]{0}', space=vmem, size = 0x8000, scoped, tag = 'input window, operand 0']
    #allocation3 [shape = 's32[2]{0}', space=sflag, size = 0x8, scoped, tag = 'scoped memory for tpu_custom_call.1']
    #allocation4 [shape = 's32[2]{0}', space=sflag, size = 0x8, scoped, tag = 'scoped memory for tpu_custom_call.1']
    #allocation5 [shape = 'u8[16384]{0}', space=vmem, size = 0x4000, scoped, tag = 'input window, operand 2, single buffered']
    #allocation6 [shape = 's32[1]{0}', space=sflag, size = 0x4, scoped, tag = 'scoped memory for tpu_custom_call.1']
    #allocation7 [shape = 'u8[32768]{0}', space=vmem, size = 0x8000, scoped, tag = 'output window, operand 0']
    %10 = vsyncpa [#allocation3], 0
    %s11 = scalar_lea.sflag [#allocation3], 1
    %12 = vsyncpa %s11, 0
    %13 = vsyncpa [#allocation6], 0
    %14 = vsyncpa [#allocation4], 0
    %s15 = scalar_lea.sflag [#allocation4], 1
    %16 = vsyncpa %s15, 0
    loop: start=0, step=1, limit=4
    $region2: #{tpu_custom_call.1} parent=1 // loop_pre_header
      _
    $region3: #{tpu_custom_call.1} parent=1 // loop_header
      %s18 = sphi 0, %s22
      %p19 = scmp.ge.s32.totalorder %s18, 4
      %s28 = sphi 0, %s30
      %s31 = sphi 0, %s28
      %s32 = sphi 0, %s31
      %s48 = sphi 0, %s32
      %s52 = sphi 0, %s52
      %s54 = sphi 0, %s52
      %s55 = sphi 0, %s54
      %s69 = sphi 0, %s55
      %s73 = sphi 0, %s73
      %s75 = sphi 0, %s73
      %s76 = sphi 0, %s75
      %s90 = sphi 0, %s76
      %s94 = sphi 0, %s94
      %s96 = sphi 0, %s94
      %s97 = sphi 0, %s96
      %s111 = sphi 0, %s97
      %s115 = sphi 0, %s115
      %s117 = sphi 0, %s115
      %s118 = sphi 0, %s117
      %s132 = sphi 0, %s118
      %s138 = sphi 0, %s140
      %s141 = sphi 0, %s138
      %s142 = sphi 0, %s141
      %s158 = sphi 0, %s142
    $region4: #{tpu_custom_call.1} parent=1 // loop_header_branch
      %21 = sbr.rel (%p19) target = $region8
    $region5: #{tpu_custom_call.1} parent=1 // loop_body
      %s23 = ssub.s32 %s18, 1
      %s24 = ssub.s32 %s18, 2
      %s25 = sadd.s32 %s18, 1
      %s26 = ssub.s32 %s18, %s25
      %p27 = scmp.eq.s32.totalorder %s26, 0
      %s29 = sadd.s32 %s28, 1
      %s30 = scalar_select %p27, %s28, %s29
      %p33 = pneg %p27
      %p34 = scmp.eq.s32.totalorder %s18, 1
      %p35 = por %p33, %p34
      %p36 = scmp.ne.s32.totalorder %s28, %s31
      %p37 = scmp.eq.s32.totalorder %s18, 0
      %p38 = por %p36, %p37
      %p39 = scmp.ne.s32.totalorder %s28, %s31
      %p40 = scmp.eq.s32.totalorder %s23, 1
      %p41 = por %p39, %p40
      %p42 = scmp.ne.s32.totalorder %s31, %s32
      %p43 = scmp.eq.s32.totalorder %s23, 0
      %p44 = por %p42, %p43
      %p45 = scmp.ne.s32.totalorder %s31, %s32
      %p46 = scmp.eq.s32.totalorder %s24, 1
      %p47 = por %p45, %p46
      %p49 = scmp.ne.s32.totalorder %s32, %s48
      %p50 = scmp.eq.s32.totalorder %s24, 0
      %p51 = por %p49, %p50
      %s53 = sadd.s32 %s52, 1
      %p56 = scmp.eq.s32.totalorder %s18, 1
      %p57 = scmp.ne.s32.totalorder %s52, %s54
      %p58 = scmp.eq.s32.totalorder %s18, 0
      %p59 = por %p57, %p58
      %p60 = scmp.ne.s32.totalorder %s52, %s54
      %p61 = scmp.eq.s32.totalorder %s23, 1
      %p62 = por %p60, %p61
      %p63 = scmp.ne.s32.totalorder %s54, %s55
      %p64 = scmp.eq.s32.totalorder %s23, 0
      %p65 = por %p63, %p64
      %p66 = scmp.ne.s32.totalorder %s54, %s55
      %p67 = scmp.eq.s32.totalorder %s24, 1
      %p68 = por %p66, %p67
      %p70 = scmp.ne.s32.totalorder %s55, %s69
      %p71 = scmp.eq.s32.totalorder %s24, 0
      %p72 = por %p70, %p71
      %s74 = sadd.s32 %s73, 1
      %p77 = scmp.eq.s32.totalorder %s18, 1
      %p78 = scmp.ne.s32.totalorder %s73, %s75
      %p79 = scmp.eq.s32.totalorder %s18, 0
      %p80 = por %p78, %p79
      %p81 = scmp.ne.s32.totalorder %s73, %s75
      %p82 = scmp.eq.s32.totalorder %s23, 1
      %p83 = por %p81, %p82
      %p84 = scmp.ne.s32.totalorder %s75, %s76
      %p85 = scmp.eq.s32.totalorder %s23, 0
      %p86 = por %p84, %p85
      %p87 = scmp.ne.s32.totalorder %s75, %s76
      %p88 = scmp.eq.s32.totalorder %s24, 1
      %p89 = por %p87, %p88
      %p91 = scmp.ne.s32.totalorder %s76, %s90
      %p92 = scmp.eq.s32.totalorder %s24, 0
      %p93 = por %p91, %p92
      %s95 = sadd.s32 %s94, 1
      %p98 = scmp.eq.s32.totalorder %s18, 1
      %p99 = scmp.ne.s32.totalorder %s94, %s96
      %p100 = scmp.eq.s32.totalorder %s18, 0
      %p101 = por %p99, %p100
      %p102 = scmp.ne.s32.totalorder %s94, %s96
      %p103 = scmp.eq.s32.totalorder %s23, 1
      %p104 = por %p102, %p103
      %p105 = scmp.ne.s32.totalorder %s96, %s97
      %p106 = scmp.eq.s32.totalorder %s23, 0
      %p107 = por %p105, %p106
      %p108 = scmp.ne.s32.totalorder %s96, %s97
      %p109 = scmp.eq.s32.totalorder %s24, 1
      %p110 = por %p108, %p109
      %p112 = scmp.ne.s32.totalorder %s97, %s111
      %p113 = scmp.eq.s32.totalorder %s24, 0
      %p114 = por %p112, %p113
      %s116 = sadd.s32 %s115, 1
      %p119 = scmp.eq.s32.totalorder %s18, 1
      %p120 = scmp.ne.s32.totalorder %s115, %s117
      %p121 = scmp.eq.s32.totalorder %s18, 0
      %p122 = por %p120, %p121
      %p123 = scmp.ne.s32.totalorder %s115, %s117
      %p124 = scmp.eq.s32.totalorder %s23, 1
      %p125 = por %p123, %p124
      %p126 = scmp.ne.s32.totalorder %s117, %s118
      %p127 = scmp.eq.s32.totalorder %s23, 0
      %p128 = por %p126, %p127
      %p129 = scmp.ne.s32.totalorder %s117, %s118
      %p130 = scmp.eq.s32.totalorder %s24, 1
      %p131 = por %p129, %p130
      %p133 = scmp.ne.s32.totalorder %s118, %s132
      %p134 = scmp.eq.s32.totalorder %s24, 0
      %p135 = por %p133, %p134
      %s136 = ssub.s32 %s18, %s25
      %p137 = scmp.eq.s32.totalorder %s136, 0
      %s139 = sadd.s32 %s138, 1
      %s140 = scalar_select %p137, %s138, %s139
      %p143 = pneg %p137
      %p144 = scmp.eq.s32.totalorder %s18, 1
      %p145 = por %p143, %p144
      %p146 = scmp.ne.s32.totalorder %s138, %s141
      %p147 = scmp.eq.s32.totalorder %s18, 0
      %p148 = por %p146, %p147
      %p149 = scmp.ne.s32.totalorder %s138, %s141
      %p150 = scmp.eq.s32.totalorder %s23, 1
      %p151 = por %p149, %p150
      %p152 = scmp.ne.s32.totalorder %s141, %s142
      %p153 = scmp.eq.s32.totalorder %s23, 0
      %p154 = por %p152, %p153
      %p155 = scmp.ne.s32.totalorder %s141, %s142
      %p156 = scmp.eq.s32.totalorder %s24, 1
      %p157 = por %p155, %p156
      %p159 = scmp.ne.s32.totalorder %s142, %s158
      %p160 = scmp.eq.s32.totalorder %s24, 0
      %p161 = por %p159, %p160
      %p162 = scmp.le.s32.totalorder 1, %s18
      %p163 = scmp.lt.s32.totalorder %s18, 3
      %p164 = pnand %p162, %p163
      %p165 = pneg %p164
      // Predicated region
      $region9: #{tpu_custom_call.1} parent=5 // pred_check
        _
      $region10: #{tpu_custom_call.1} parent=5 // pred_check_branch
        %167 = sbr.rel (%p164) target = $region12
      $region11: #{tpu_custom_call.1} parent=5 // pred_region
        %s168 = ssub.s32 %s18, 1
        // Predicated region
        $region13: #{tpu_custom_call.1} parent=11 // pred_check
          %p169 = pneg %p65
        $region14: #{tpu_custom_call.1} parent=11 // pred_check_branch
          %171 = sbr.rel (%p169) target = $region16
        $region15: #{tpu_custom_call.1} parent=11 // pred_region
          _
        $region16: #{tpu_custom_call.1} parent=11 // pred_fallthru
          _
        // Predicated region
        $region17: #{tpu_custom_call.1} parent=11 // pred_check
          %p172 = pneg %p86
        $region18: #{tpu_custom_call.1} parent=11 // pred_check_branch
          %174 = sbr.rel (%p172) target = $region20
        $region19: #{tpu_custom_call.1} parent=11 // pred_region
          %s176 = ssub.s32 512, 512
          %177 = vsyncadd [#allocation6], %s176
          %s178 = sshll.u32 [#allocation5], 4
          %s179 = int_to_ptr.vmem [resolvable:$true] %s178
          %184 = dma.hbm_to_vmem [thread:$0]  %s2, 512, %s179, [#allocation6], 256, 256, 16
        $region20: #{tpu_custom_call.1} parent=11 // pred_fallthru
          _
        // Predicated region
        $region21: #{tpu_custom_call.1} parent=11 // pred_check
          %p185 = pneg %p107
        $region22: #{tpu_custom_call.1} parent=11 // pred_check_branch
          %187 = sbr.rel (%p185) target = $region24
        $region23: #{tpu_custom_call.1} parent=11 // pred_region
          _
        $region24: #{tpu_custom_call.1} parent=11 // pred_fallthru
          _
        // Predicated region
        $region25: #{tpu_custom_call.1} parent=11 // pred_check
          %p188 = pneg %p128
        $region26: #{tpu_custom_call.1} parent=11 // pred_check_branch
          %190 = sbr.rel (%p188) target = $region28
        $region27: #{tpu_custom_call.1} parent=11 // pred_region
          _
        $region28: #{tpu_custom_call.1} parent=11 // pred_fallthru
          _
      $region12: #{tpu_custom_call.1} parent=5 // pred_fallthru
        _
      %p191 = scmp.lt.s32.totalorder %s18, 2
      // Predicated region
      $region29: #{tpu_custom_call.1} parent=5 // pred_check
        %p192 = pneg %p191
      $region30: #{tpu_custom_call.1} parent=5 // pred_check_branch
        %194 = sbr.rel (%p192) target = $region32
      $region31: #{tpu_custom_call.1} parent=5 // pred_region
        // Predicated region
        $region33: #{tpu_custom_call.1} parent=31 // pred_check
          %p195 = pneg %p38
        $region34: #{tpu_custom_call.1} parent=31 // pred_check_branch
          %197 = sbr.rel (%p195) target = $region36
        $region35: #{tpu_custom_call.1} parent=31 // pred_region
          %s198 = sand.u32 %s28, 1
          %s199 = scalar_lea.sflag [#allocation3], %s198
          %s200 = sand.u32 %s28, 1
          %s201 = smul.addr %s200, 32
          %s202 = scalar_lea.vmem [#allocation2], %s201
          %s204 = ssub.s32 512, 512
          %205 = vsyncadd %s199, %s204
          %s206 = smul.addr %s18, 4
          %s207 = smul.addr %s206, 128
          %s208 = scalar_lea.hbm %s0, %s207
          %s209 = sshll.u32 %s202, 4
          %s210 = int_to_ptr.vmem [resolvable:$true] %s209
          %215 = dma.hbm_to_vmem [thread:$0]  %s208, 512, %s210, %s199, 256, 256, 16
        $region36: #{tpu_custom_call.1} parent=31 // pred_fallthru
          _
      $region32: #{tpu_custom_call.1} parent=5 // pred_fallthru
        _
      %p216 = scmp.le.s32.totalorder 1, %s18
      %p217 = scmp.lt.s32.totalorder %s18, 3
      %p218 = pnand %p216, %p217
      %p219 = pneg %p218
      // Predicated region
      $region37: #{tpu_custom_call.1} parent=5 // pred_check
        _
      $region38: #{tpu_custom_call.1} parent=5 // pred_check_branch
        %221 = sbr.rel (%p218) target = $region40
      $region39: #{tpu_custom_call.1} parent=5 // pred_region
        %s222 = ssub.s32 %s18, 1
        %s223 = sand.u32 %s31, 1
        %s224 = scalar_lea.sflag [#allocation3], %s223
        %s225 = sand.u32 %s31, 1
        %s226 = smul.addr %s225, 32
        %s227 = scalar_lea.vmem [#allocation2], %s226
        // Predicated region
        $region41: #{tpu_custom_call.1} parent=39 // pred_check
          %p228 = pneg %p44
        $region42: #{tpu_custom_call.1} parent=39 // pred_check_branch
          %230 = sbr.rel (%p228) target = $region44
        $region43: #{tpu_custom_call.1} parent=39 // pred_region
          %231 = dma.done %s224, 512
        $region44: #{tpu_custom_call.1} parent=39 // pred_fallthru
          _
        // Predicated region
        $region45: #{tpu_custom_call.1} parent=39 // pred_check
          %p232 = pneg %p86
        $region46: #{tpu_custom_call.1} parent=39 // pred_check_branch
          %234 = sbr.rel (%p232) target = $region48
        $region47: #{tpu_custom_call.1} parent=39 // pred_region
          %235 = dma.done [#allocation6], 512
        $region48: #{tpu_custom_call.1} parent=39 // pred_fallthru
          _
        %s236 = sand.u32 %s31, 1
        %s237 = scalar_lea.sflag [#allocation3], %s236
        %s238 = sand.u32 %s31, 1
        %s239 = smul.addr %s238, 32
        %s240 = scalar_lea.vmem [#allocation2], %s239
        %p241 = pneg %p44
        %p242 = pneg %p41
        %p243 = pneg %p65
        %p244 = pneg %p62
        %p245 = pneg %p86
        %p246 = pneg %p83
        %p247 = pneg %p107
        %p248 = pneg %p104
        %p249 = pneg %p128
        %p250 = pneg %p125
        %p251 = pneg %p154
        %p252 = pneg %p151
        %s253 = sand.u32 %s141, 1
        %s254 = scalar_lea.sflag [#allocation4], %s253
        %s255 = sand.u32 %s141, 1
        %s256 = smul.addr %s255, 32
        %s257 = scalar_lea.vmem [#allocation7], %s256
        %v259 = vld [vmem:[%s227] sm:$0xff]
        %v260 = vld [vmem:[%s227 + $0x8] sm:$0xff]
        %v261 = vld [vmem:[%s227 + $0x10] sm:$0xff]
        %v262 = vld [vmem:[%s227 + $0x18] sm:$0xff]
        %v263 = vld [vmem:[%s1] sm:$0xff]
        %v264 = vld [vmem:[%s1 + $0x8] sm:$0xff]
        %v265 = vld [vmem:[#allocation5] ss:$8 sm:$0x3]
        %s266 = scalar_lea.vmem [#allocation5], 1
        %v267 = vld [vmem:[%s266] ss:$8 sm:$0x3]
        %s268 = scalar_lea.vmem [#allocation5], 2
        %v269 = vld [vmem:[%s268] ss:$8 sm:$0x3]
        %s270 = scalar_lea.vmem [#allocation5], 3
        %v271 = vld [vmem:[%s270] ss:$8 sm:$0x3]
        %s272 = scalar_lea.vmem [#allocation5], 5
        %v273 = vld [vmem:[%s272] ss:$8 sm:$0x3]
        %s274 = scalar_lea.vmem [#allocation5], 6
        %v275 = vld [vmem:[%s274] ss:$8 sm:$0x3]
        %s276 = scalar_lea.vmem [#allocation5], 7
        %v277 = vld [vmem:[%s276] ss:$8 sm:$0x3]
        %s278 = scalar_lea.vmem [#allocation5], 16
        %v279 = vld [vmem:[%s278] ss:$8 sm:$0x3]
        %v280 = vadd.f32 %v259, %v260
        %281 = vadd.xlane.f32.xlu0 %v280
        %v282 = vpop.xlane.xlu0 %281
        %v283 = vadd.f32 %v261, %v262
        %284 = vadd.xlane.f32.xlu0 %v283
        %v285 = vpop.xlane.xlu0 %284
        %vm286 = vcmask 1043456
        %v287 = vsel %vm286, %v282, 0.0
        %v288 = vrot.slane %v287, 4
        %v289 = vadd.f32 %v287, %v288
        %v290 = vrot.slane %v289, 2
        %v291 = vadd.f32 %v289, %v290
        %v292 = vrot.slane %v291, 1
        %v293 = vadd.f32 %v291, %v292
        %vm294 = vcmp.eq.f32.partialorder %v263, 0.0
        %vm295 = vcmp.eq.f32.partialorder %v264, 0.0
        %v296 = vsel %vm294, %v293, 0.0
        %v297 = vsel %vm295, %v293, 0.0
        %v299 = vrot.slane %v282, 4
        %v301 = vsel %vm286, %v299, 0.0
        %v302 = vrot.slane %v301, 4
        %v303 = vadd.f32 %v301, %v302
        %v304 = vrot.slane %v303, 2
        %v305 = vadd.f32 %v303, %v304
        %v306 = vrot.slane %v305, 1
        %v307 = vadd.f32 %v305, %v306
        %vm308 = vcmp.eq.f32.partialorder %v263, 1.0
        %vm309 = vcmp.eq.f32.partialorder %v264, 1.0
        %v310 = vsel %vm308, %v307, %v296
        %v311 = vsel %vm309, %v307, %v297
        %v312 = vsel %vm286, %v285, 0.0
        %v313 = vrot.slane %v312, 4
        %v314 = vadd.f32 %v312, %v313
        %v315 = vrot.slane %v314, 2
        %v316 = vadd.f32 %v314, %v315
        %v317 = vrot.slane %v316, 1
        %v318 = vadd.f32 %v316, %v317
        %vm319 = vcmp.eq.f32.partialorder %v263, 2.0
        %vm320 = vcmp.eq.f32.partialorder %v264, 2.0
        %v321 = vsel %vm319, %v318, %v310
        %v322 = vsel %vm320, %v318, %v311
        %v324 = vrot.slane %v285, 4
        %v326 = vsel %vm286, %v324, 0.0
        %v327 = vrot.slane %v326, 4
        %v328 = vadd.f32 %v326, %v327
        %v329 = vrot.slane %v328, 2
        %v330 = vadd.f32 %v328, %v329
        %v331 = vrot.slane %v330, 1
        %v332 = vadd.f32 %v330, %v331
        %vm333 = vcmp.eq.f32.partialorder %v263, 3.0
        %vm334 = vcmp.eq.f32.partialorder %v264, 3.0
        %v335 = vsel %vm333, %v332, %v321
        %v336 = vsel %vm334, %v332, %v322
        %v337 = vmul.f32 %v335, 0.0009765625
        %v338 = vmul.f32 %v336, 0.0009765625
        %340 = vset.pattern.permute.xlu0 6
        %341 = vperm.xlu0 %340, %v337
        %v342 = vpop.permute.xlu0 %341
        %345 = vset.pattern.permute.xlu0 6
        %346 = vperm.xlu0 %345, %v338
        %v347 = vpop.permute.xlu0 %346
        %v349 = vsub.f32 %v259, %v342
        %v350 = vsub.f32 %v260, %v342
        %v351 = vsub.f32 %v261, %v347
        %v352 = vsub.f32 %v262, %v347
        %v353 = vmul.f32 %v349, %v349
        %v354 = vmul.f32 %v350, %v350
        %v355 = vmul.f32 %v351, %v351
        %v356 = vmul.f32 %v352, %v352
        %v357 = vadd.f32 %v353, %v354
        %358 = vadd.xlane.f32.xlu0 %v357
        %v359 = vpop.xlane.xlu0 %358
        %v360 = vadd.f32 %v355, %v356
        %361 = vadd.xlane.f32.xlu0 %v360
        %v362 = vpop.xlane.xlu0 %361
        %v363 = vsel %vm286, %v359, 0.0
        %v364 = vrot.slane %v363, 4
        %v365 = vadd.f32 %v363, %v364
        %v366 = vrot.slane %v365, 2
        %v367 = vadd.f32 %v365, %v366
        %v368 = vrot.slane %v367, 1
        %v369 = vadd.f32 %v367, %v368
        %v370 = vsel %vm294, %v369, 0.0
        %v371 = vsel %vm295, %v369, 0.0
        %v373 = vrot.slane %v359, 4
        %v375 = vsel %vm286, %v373, 0.0
        %v376 = vrot.slane %v375, 4
        %v377 = vadd.f32 %v375, %v376
        %v378 = vrot.slane %v377, 2
        %v379 = vadd.f32 %v377, %v378
        %v380 = vrot.slane %v379, 1
        %v381 = vadd.f32 %v379, %v380
        %v382 = vsel %vm308, %v381, %v370
        %v383 = vsel %vm309, %v381, %v371
        %v384 = vsel %vm286, %v362, 0.0
        %v385 = vrot.slane %v384, 4
        %v386 = vadd.f32 %v384, %v385
        %v387 = vrot.slane %v386, 2
        %v388 = vadd.f32 %v386, %v387
        %v389 = vrot.slane %v388, 1
        %v390 = vadd.f32 %v388, %v389
        %v391 = vsel %vm319, %v390, %v382
        %v392 = vsel %vm320, %v390, %v383
        %v394 = vrot.slane %v362, 4
        %v396 = vsel %vm286, %v394, 0.0
        %v397 = vrot.slane %v396, 4
        %v398 = vadd.f32 %v396, %v397
        %v399 = vrot.slane %v398, 2
        %v400 = vadd.f32 %v398, %v399
        %v401 = vrot.slane %v400, 1
        %v402 = vadd.f32 %v400, %v401
        %v403 = vsel %vm333, %v402, %v391
        %v404 = vsel %vm334, %v402, %v392
        %v405 = vmul.f32 %v403, 0.0009765625
        %v406 = vmul.f32 %v404, 0.0009765625
        %v407 = vadd.f32 %v405, 1e-05
        %v408 = vadd.f32 %v406, 1e-05
        %v409 = vrsqrt.pop %v407
        %v410 = vrsqrt.pop %v408
        %413 = vrot.lane.b32.xlu0 %v409, 122
        %v414 = vpop.permute.xlu0 %413
        %415 = vrot.lane.b32.xlu0 %v410, 122
        %v416 = vpop.permute.xlu0 %415
        %v419 = vmul.f32 %v263, %v414
        %v420 = vmul.f32 %v264, %v416
        %422 = vset.pattern.permute.xlu0 0
        %423 = vperm.xlu0 %422, %v419
        %v424 = vpop.permute.xlu0 %423
        %427 = vset.pattern.permute.xlu0 0
        %428 = vperm.xlu0 %427, %v420
        %v429 = vpop.permute.xlu0 %428
        %v431 = vmul.f32 %v349, %v424
        %v432 = vmul.f32 %v350, %v424
        %v433 = vmul.f32 %v351, %v429
        %v434 = vmul.f32 %v352, %v429
        %436 = vset.pattern.permute.xlu0 1
        %437 = vperm.xlu0 %436, %v263
        %v438 = vpop.permute.xlu0 %437
        %441 = vset.pattern.permute.xlu0 1
        %442 = vperm.xlu0 %441, %v264
        %v443 = vpop.permute.xlu0 %442
        %v445 = vadd.f32 %v431, %v438
        %v446 = vadd.f32 %v432, %v438
        %v447 = vadd.f32 %v433, %v443
        %v448 = vadd.f32 %v434, %v443
        %vm449 = vcmp.ge.f32.partialorder %v445, 0.0
        %vm450 = vcmp.ge.f32.partialorder %v446, 0.0
        %vm451 = vcmp.ge.f32.partialorder %v447, 0.0
        %vm452 = vcmp.ge.f32.partialorder %v448, 0.0
        %v453 = vmul.f32 %v445, 0.2
        %v454 = vmul.f32 %v446, 0.2
        %v455 = vmul.f32 %v447, 0.2
        %v456 = vmul.f32 %v448, 0.2
        %v457 = vsel %vm449, %v445, %v453
        %v458 = vsel %vm450, %v446, %v454
        %v459 = vsel %vm451, %v447, %v455
        %v460 = vsel %vm452, %v448, %v456
        %461 = vrot.lane.b32.xlu0 %v457, 17
        %v462 = vpop.permute.xlu0 %461
        %463 = vrot.lane.b32.xlu0 %v459, 17
        %v464 = vpop.permute.xlu0 %463
        %465 = vrot.lane.b32.xlu0 %v458, 17
        %v466 = vpop.permute.xlu0 %465
        %467 = vrot.lane.b32.xlu0 %v460, 17
        %v468 = vpop.permute.xlu0 %467
        %v469 = vlaneseq
        %v470 = vand.u32 %v469, 127
        %vm471 = vcmp.lt.s32.totalorder %v470, 17
        %v472 = vsel %vm471, %v462, %v466
        %v473 = vsel %vm471, %v464, %v468
        %v474 = vsel %vm471, %v466, %v462
        %v475 = vsel %vm471, %v468, %v464
        %v477 = vlaneseq
        %v478 = vshrl.u32 %v477, 7
        %v479 = vsub.s32 0, %v478
        %v480 = vrot.slane %v265, %v479
        %v481 = vlaneseq
        %v482 = vshrl.u32 %v481, 7
        %v483 = vsub.s32 1, %v482
        %v484 = vrot.slane %v265, %v483
        %v487 = vmul.f32 %v474, %v480
        %v488 = vmul.f32 %v472, %v484
        %v489 = vmul.f32 %v475, %v480
        %v490 = vmul.f32 %v473, %v484
        %v491 = vpack.c.bf16 %v489, %v487
        %v492 = vpack.c.bf16 %v490, %v488
        %493 = vrot.lane.b32.xlu0 %v457, 16
        %v494 = vpop.permute.xlu0 %493
        %495 = vrot.lane.b32.xlu0 %v459, 16
        %v496 = vpop.permute.xlu0 %495
        %497 = vrot.lane.b32.xlu0 %v458, 16
        %v498 = vpop.permute.xlu0 %497
        %499 = vrot.lane.b32.xlu0 %v460, 16
        %v500 = vpop.permute.xlu0 %499
        %vm501 = vcmp.lt.s32.totalorder %v470, 16
        %v502 = vsel %vm501, %v494, %v498
        %v503 = vsel %vm501, %v496, %v500
        %v504 = vsel %vm501, %v498, %v494
        %v505 = vsel %vm501, %v500, %v496
        %v507 = vlaneseq
        %v508 = vshrl.u32 %v507, 7
        %v509 = vsub.s32 0, %v508
        %v510 = vrot.slane %v267, %v509
        %v511 = vlaneseq
        %v512 = vshrl.u32 %v511, 7
        %v513 = vsub.s32 1, %v512
        %v514 = vrot.slane %v267, %v513
        %v517 = vmul.f32 %v504, %v510
        %v518 = vmul.f32 %v502, %v514
        %v519 = vmul.f32 %v505, %v510
        %v520 = vmul.f32 %v503, %v514
        %v521 = vpack.c.bf16 %v519, %v517
        %v522 = vpack.c.bf16 %v520, %v518
        %523 = vrot.lane.b32.xlu0 %v457, 15
        %v524 = vpop.permute.xlu0 %523
        %525 = vrot.lane.b32.xlu0 %v459, 15
        %v526 = vpop.permute.xlu0 %525
        %527 = vrot.lane.b32.xlu0 %v458, 15
        %v528 = vpop.permute.xlu0 %527
        %529 = vrot.lane.b32.xlu0 %v460, 15
        %v530 = vpop.permute.xlu0 %529
        %vm531 = vcmp.lt.s32.totalorder %v470, 15
        %v532 = vsel %vm531, %v524, %v528
        %v533 = vsel %vm531, %v526, %v530
        %v534 = vsel %vm531, %v528, %v524
        %v535 = vsel %vm531, %v530, %v526
        %v537 = vlaneseq
        %v538 = vshrl.u32 %v537, 7
        %v539 = vsub.s32 0, %v538
        %v540 = vrot.slane %v269, %v539
        %v541 = vlaneseq
        %v542 = vshrl.u32 %v541, 7
        %v543 = vsub.s32 1, %v542
        %v544 = vrot.slane %v269, %v543
        %v547 = vmul.f32 %v534, %v540
        %v548 = vmul.f32 %v532, %v544
        %v549 = vmul.f32 %v535, %v540
        %v550 = vmul.f32 %v533, %v544
        %v551 = vpack.c.bf16 %v549, %v547
        %v552 = vpack.c.bf16 %v550, %v548
        %553 = vrot.lane.b32.xlu0 %v457, 1
        %v554 = vpop.permute.xlu0 %553
        %555 = vrot.lane.b32.xlu0 %v459, 1
        %v556 = vpop.permute.xlu0 %555
        %557 = vrot.lane.b32.xlu0 %v458, 1
        %v558 = vpop.permute.xlu0 %557
        %559 = vrot.lane.b32.xlu0 %v460, 1
        %v560 = vpop.permute.xlu0 %559
        %vm561 = vcmp.lt.s32.totalorder %v470, 1
        %v562 = vsel %vm561, %v554, %v558
        %v563 = vsel %vm561, %v556, %v560
        %v564 = vsel %vm561, %v558, %v554
        %v565 = vsel %vm561, %v560, %v556
        %v567 = vlaneseq
        %v568 = vshrl.u32 %v567, 7
        %v569 = vsub.s32 0, %v568
        %v570 = vrot.slane %v271, %v569
        %v571 = vlaneseq
        %v572 = vshrl.u32 %v571, 7
        %v573 = vsub.s32 1, %v572
        %v574 = vrot.slane %v271, %v573
        %v577 = vmul.f32 %v564, %v570
        %v578 = vmul.f32 %v562, %v574
        %v579 = vmul.f32 %v565, %v570
        %v580 = vmul.f32 %v563, %v574
        %v581 = vpack.c.bf16 %v579, %v577
        %v582 = vpack.c.bf16 %v580, %v578
        %v583 = vpack.c.bf16 %v459, %v457
        %v584 = vpack.c.bf16 %v460, %v458
        %585 = vrot.lane.b32.xlu0 %v457, 127
        %v586 = vpop.permute.xlu0 %585
        %587 = vrot.lane.b32.xlu0 %v459, 127
        %v588 = vpop.permute.xlu0 %587
        %589 = vrot.lane.b32.xlu0 %v458, 127
        %v590 = vpop.permute.xlu0 %589
        %591 = vrot.lane.b32.xlu0 %v460, 127
        %v592 = vpop.permute.xlu0 %591
        %vm593 = vcmp.lt.s32.totalorder %v470, 127
        %v594 = vsel %vm593, %v586, %v590
        %v595 = vsel %vm593, %v588, %v592
        %v596 = vsel %vm593, %v590, %v586
        %v597 = vsel %vm593, %v592, %v588
        %v599 = vlaneseq
        %v600 = vshrl.u32 %v599, 7
        %v601 = vsub.s32 0, %v600
        %v602 = vrot.slane %v273, %v601
        %v603 = vlaneseq
        %v604 = vshrl.u32 %v603, 7
        %v605 = vsub.s32 1, %v604
        %v606 = vrot.slane %v273, %v605
        %v609 = vmul.f32 %v594, %v602
        %v610 = vmul.f32 %v596, %v606
        %v611 = vmul.f32 %v595, %v602
        %v612 = vmul.f32 %v597, %v606
        %v613 = vpack.c.bf16 %v611, %v609
        %v614 = vpack.c.bf16 %v612, %v610
        %615 = vrot.lane.b32.xlu0 %v457, 113
        %v616 = vpop.permute.xlu0 %615
        %617 = vrot.lane.b32.xlu0 %v459, 113
        %v618 = vpop.permute.xlu0 %617
        %619 = vrot.lane.b32.xlu0 %v458, 113
        %v620 = vpop.permute.xlu0 %619
        %621 = vrot.lane.b32.xlu0 %v460, 113
        %v622 = vpop.permute.xlu0 %621
        %vm623 = vcmp.lt.s32.totalorder %v470, 113
        %v624 = vsel %vm623, %v616, %v620
        %v625 = vsel %vm623, %v618, %v622
        %v626 = vsel %vm623, %v620, %v616
        %v627 = vsel %vm623, %v622, %v618
        %v629 = vlaneseq
        %v630 = vshrl.u32 %v629, 7
        %v631 = vsub.s32 0, %v630
        %v632 = vrot.slane %v275, %v631
        %v633 = vlaneseq
        %v634 = vshrl.u32 %v633, 7
        %v635 = vsub.s32 1, %v634
        %v636 = vrot.slane %v275, %v635
        %v639 = vmul.f32 %v624, %v632
        %v640 = vmul.f32 %v626, %v636
        %v641 = vmul.f32 %v625, %v632
        %v642 = vmul.f32 %v627, %v636
        %v643 = vpack.c.bf16 %v641, %v639
        %v644 = vpack.c.bf16 %v642, %v640
        %645 = vrot.lane.b32.xlu0 %v457, 112
        %v646 = vpop.permute.xlu0 %645
        %647 = vrot.lane.b32.xlu0 %v459, 112
        %v648 = vpop.permute.xlu0 %647
        %649 = vrot.lane.b32.xlu0 %v458, 112
        %v650 = vpop.permute.xlu0 %649
        %651 = vrot.lane.b32.xlu0 %v460, 112
        %v652 = vpop.permute.xlu0 %651
        %vm653 = vcmp.lt.s32.totalorder %v470, 112
        %v654 = vsel %vm653, %v646, %v650
        %v655 = vsel %vm653, %v648, %v652
        %v656 = vsel %vm653, %v650, %v646
        %v657 = vsel %vm653, %v652, %v648
        %v659 = vlaneseq
        %v660 = vshrl.u32 %v659, 7
        %v661 = vsub.s32 0, %v660
        %v662 = vrot.slane %v277, %v661
        %v663 = vlaneseq
        %v664 = vshrl.u32 %v663, 7
        %v665 = vsub.s32 1, %v664
        %v666 = vrot.slane %v277, %v665
        %v669 = vmul.f32 %v654, %v662
        %v670 = vmul.f32 %v656, %v666
        %v671 = vmul.f32 %v655, %v662
        %v672 = vmul.f32 %v657, %v666
        %v673 = vpack.c.bf16 %v671, %v669
        %v674 = vpack.c.bf16 %v672, %v670
        %675 = vrot.lane.b32.xlu0 %v457, 111
        %v676 = vpop.permute.xlu0 %675
        %677 = vrot.lane.b32.xlu0 %v459, 111
        %v678 = vpop.permute.xlu0 %677
        %679 = vrot.lane.b32.xlu0 %v458, 111
        %v680 = vpop.permute.xlu0 %679
        %681 = vrot.lane.b32.xlu0 %v460, 111
        %v682 = vpop.permute.xlu0 %681
        %vm683 = vcmp.lt.s32.totalorder %v470, 111
        %v684 = vsel %vm683, %v676, %v680
        %v685 = vsel %vm683, %v678, %v682
        %v686 = vsel %vm683, %v680, %v676
        %v687 = vsel %vm683, %v682, %v678
        %v689 = vlaneseq
        %v690 = vshrl.u32 %v689, 7
        %v691 = vsub.s32 0, %v690
        %v692 = vrot.slane %v279, %v691
        %v693 = vlaneseq
        %v694 = vshrl.u32 %v693, 7
        %v695 = vsub.s32 1, %v694
        %v696 = vrot.slane %v279, %v695
        %v699 = vmul.f32 %v684, %v692
        %v700 = vmul.f32 %v686, %v696
        %v701 = vmul.f32 %v685, %v692
        %v702 = vmul.f32 %v687, %v696
        %v703 = vpack.c.bf16 %v701, %v699
        %v704 = vpack.c.bf16 %v702, %v700
        %v705 = vld [vmem:[%s3] sm:$0xff]
        %v706 = vld [vmem:[%s3 + $0x8] sm:$0xff]
        %707 = vset.pattern.permute.xlu0 2
        %708 = vperm.xlu0 %707, %v263
        %v709 = vpop.permute.xlu0 %708
        %711 = vset.pattern.permute.xlu0 2
        %712 = vperm.xlu0 %711, %v264
        %v713 = vpop.permute.xlu0 %712
        %v717 = vunpack.c.l.b16 %v705
        %v718 = vunpack.c.h.b16 %v705
        %v719 = vunpack.c.l.b16 %v706
        %v720 = vunpack.c.h.b16 %v706
        %v721 = vpack.c.b16 %v719, %v717
        %v722 = vpack.c.b16 %v720, %v718
        %vm724 = vcmask 130048
        %v726 = vsel %vm724, %v722, 0
        %728 = vmatprep.subr.bf16.mxu0 %v492
        %729 = vmatpush1.bf16.msra.mxu0 %v491
        %730 = vmatprep.subr.bf16.mxu0 %v522
        %731 = vmatpush1.bf16.msra.mxu0 %v521
        %732 = vmatprep.subr.bf16.mxu0 %v552
        %733 = vmatpush1.bf16.msra.mxu0 %v551
        %734 = vmatprep.subr.bf16.mxu0 %v582
        %735 = vmatpush1.bf16.msra.mxu0 %v581
        %736 = vmatprep.subr.bf16.mxu0 %v584
        %737 = vmatpush1.bf16.msra.mxu0 %v583
        %738 = vmatprep.subr.bf16.mxu0 %v614
        %739 = vmatpush1.bf16.msra.mxu0 %v613
        %740 = vmatprep.subr.bf16.mxu0 %v644
        %741 = vmatpush1.bf16.msra.mxu0 %v643
        %742 = vmatprep.subr.bf16.mxu0 %v674
        %743 = vmatpush1.bf16.msra.mxu0 %v673
        %744 = vmatprep.subr.bf16.mxu0 %v704
        %745 = vmatpush1.bf16.msra.mxu0 %v703
        %746 = vmatprep.subr.bf16.mxu0 0
        %747 = vmatpush1.bf16.msra.mxu0 0
        %748 = vmatprep.subr.bf16.mxu0 0
        %749 = vmatpush1.bf16.msra.mxu0 0
        %750 = vmatprep.subr.bf16.mxu0 0
        %751 = vmatpush1.bf16.msra.mxu0 0
        %752 = vmatprep.subr.bf16.mxu0 0
        %753 = vmatpush1.bf16.msra.mxu0 0
        %754 = vmatprep.subr.bf16.mxu0 0
        %755 = vmatpush1.bf16.msra.mxu0 0
        %756 = vmatprep.subr.bf16.mxu0 0
        %757 = vmatpush1.bf16.msra.mxu0 0
        %758 = vmatprep.subr.bf16.mxu0 0
        %759 = vmatpush1.bf16.msra.mxu0 0
        %760 = vmatprep.mubr.bf16.mxu0 %v726
        %761 = vmatmul.mubr.bf16.gmra.mrb[0].mxu0 %v721
        %v762 = vpop.f32.mrb[0].mxu0
        %v763 = vadd.f32 %v709, %v762
        %v764 = vpop.f32.mrb[0].mxu0
        %v765 = vadd.f32 %v709, %v764
        %v766 = vpop.f32.mrb[0].mxu0
        %v767 = vadd.f32 %v713, %v766
        %v768 = vpop.f32.mrb[0].mxu0
        %v769 = vadd.f32 %v713, %v768
        %770 = vdwg.mxu0
        %v771 = vadd.f32 %v763, %v765
        %772 = vadd.xlane.f32.xlu0 %v771
        %v773 = vpop.xlane.xlu0 %772
        %v774 = vadd.f32 %v767, %v769
        %775 = vadd.xlane.f32.xlu0 %v774
        %v776 = vpop.xlane.xlu0 %775
        %v777 = vsel %vm286, %v773, 0.0
        %v778 = vrot.slane %v777, 4
        %v779 = vadd.f32 %v777, %v778
        %v780 = vrot.slane %v779, 2
        %v781 = vadd.f32 %v779, %v780
        %v782 = vrot.slane %v781, 1
        %v783 = vadd.f32 %v781, %v782
        %v784 = vsel %vm294, %v783, 0.0
        %v785 = vsel %vm295, %v783, 0.0
        %v787 = vrot.slane %v773, 4
        %v789 = vsel %vm286, %v787, 0.0
        %v790 = vrot.slane %v789, 4
        %v791 = vadd.f32 %v789, %v790
        %v792 = vrot.slane %v791, 2
        %v793 = vadd.f32 %v791, %v792
        %v794 = vrot.slane %v793, 1
        %v795 = vadd.f32 %v793, %v794
        %v796 = vsel %vm308, %v795, %v784
        %v797 = vsel %vm309, %v795, %v785
        %v798 = vsel %vm286, %v776, 0.0
        %v799 = vrot.slane %v798, 4
        %v800 = vadd.f32 %v798, %v799
        %v801 = vrot.slane %v800, 2
        %v802 = vadd.f32 %v800, %v801
        %v803 = vrot.slane %v802, 1
        %v804 = vadd.f32 %v802, %v803
        %v805 = vsel %vm319, %v804, %v796
        %v806 = vsel %vm320, %v804, %v797
        %v808 = vrot.slane %v776, 4
        %v810 = vsel %vm286, %v808, 0.0
        %v811 = vrot.slane %v810, 4
        %v812 = vadd.f32 %v810, %v811
        %v813 = vrot.slane %v812, 2
        %v814 = vadd.f32 %v812, %v813
        %v815 = vrot.slane %v814, 1
        %v816 = vadd.f32 %v814, %v815
        %v817 = vsel %vm333, %v816, %v805
        %v818 = vsel %vm334, %v816, %v806
        %v819 = vmul.f32 %v817, 0.0009765625
        %v820 = vmul.f32 %v818, 0.0009765625
        %822 = vset.pattern.permute.xlu0 6
        %823 = vperm.xlu0 %822, %v819
        %v824 = vpop.permute.xlu0 %823
        %827 = vset.pattern.permute.xlu0 6
        %828 = vperm.xlu0 %827, %v820
        %v829 = vpop.permute.xlu0 %828
        %v831 = vsub.f32 %v763, %v824
        %v832 = vsub.f32 %v765, %v824
        %v833 = vsub.f32 %v767, %v829
        %v834 = vsub.f32 %v769, %v829
        %v835 = vmul.f32 %v831, %v831
        %v836 = vmul.f32 %v832, %v832
        %v837 = vmul.f32 %v833, %v833
        %v838 = vmul.f32 %v834, %v834
        %v839 = vadd.f32 %v835, %v836
        %840 = vadd.xlane.f32.xlu0 %v839
        %v841 = vpop.xlane.xlu0 %840
        %v842 = vadd.f32 %v837, %v838
        %843 = vadd.xlane.f32.xlu0 %v842
        %v844 = vpop.xlane.xlu0 %843
        %v845 = vsel %vm286, %v841, 0.0
        %v846 = vrot.slane %v845, 4
        %v847 = vadd.f32 %v845, %v846
        %v848 = vrot.slane %v847, 2
        %v849 = vadd.f32 %v847, %v848
        %v850 = vrot.slane %v849, 1
        %v851 = vadd.f32 %v849, %v850
        %v852 = vsel %vm294, %v851, 0.0
        %v853 = vsel %vm295, %v851, 0.0
        %v855 = vrot.slane %v841, 4
        %v857 = vsel %vm286, %v855, 0.0
        %v858 = vrot.slane %v857, 4
        %v859 = vadd.f32 %v857, %v858
        %v860 = vrot.slane %v859, 2
        %v861 = vadd.f32 %v859, %v860
        %v862 = vrot.slane %v861, 1
        %v863 = vadd.f32 %v861, %v862
        %v864 = vsel %vm308, %v863, %v852
        %v865 = vsel %vm309, %v863, %v853
        %v866 = vsel %vm286, %v844, 0.0
        %v867 = vrot.slane %v866, 4
        %v868 = vadd.f32 %v866, %v867
        %v869 = vrot.slane %v868, 2
        %v870 = vadd.f32 %v868, %v869
        %v871 = vrot.slane %v870, 1
        %v872 = vadd.f32 %v870, %v871
        %v873 = vsel %vm319, %v872, %v864
        %v874 = vsel %vm320, %v872, %v865
        %v876 = vrot.slane %v844, 4
        %v878 = vsel %vm286, %v876, 0.0
        %v879 = vrot.slane %v878, 4
        %v880 = vadd.f32 %v878, %v879
        %v881 = vrot.slane %v880, 2
        %v882 = vadd.f32 %v880, %v881
        %v883 = vrot.slane %v882, 1
        %v884 = vadd.f32 %v882, %v883
        %v885 = vsel %vm333, %v884, %v873
        %v886 = vsel %vm334, %v884, %v874
        %v887 = vmul.f32 %v885, 0.0009765625
        %v888 = vmul.f32 %v886, 0.0009765625
        %v889 = vadd.f32 %v887, 1e-05
        %v890 = vadd.f32 %v888, 1e-05
        %v891 = vrsqrt.pop %v889
        %v892 = vrsqrt.pop %v890
        %895 = vrot.lane.b32.xlu0 %v891, 125
        %v896 = vpop.permute.xlu0 %895
        %897 = vrot.lane.b32.xlu0 %v892, 125
        %v898 = vpop.permute.xlu0 %897
        %v901 = vmul.f32 %v263, %v896
        %v902 = vmul.f32 %v264, %v898
        %904 = vset.pattern.permute.xlu0 3
        %905 = vperm.xlu0 %904, %v901
        %v906 = vpop.permute.xlu0 %905
        %909 = vset.pattern.permute.xlu0 3
        %910 = vperm.xlu0 %909, %v902
        %v911 = vpop.permute.xlu0 %910
        %v913 = vmul.f32 %v831, %v906
        %v914 = vmul.f32 %v832, %v906
        %v915 = vmul.f32 %v833, %v911
        %v916 = vmul.f32 %v834, %v911
        %917 = vset.pattern.permute.xlu0 4
        %918 = vperm.xlu0 %917, %v263
        %v919 = vpop.permute.xlu0 %918
        %921 = vset.pattern.permute.xlu0 4
        %922 = vperm.xlu0 %921, %v264
        %v923 = vpop.permute.xlu0 %922
        %v925 = vadd.f32 %v913, %v919
        %v926 = vadd.f32 %v914, %v919
        %v927 = vadd.f32 %v915, %v923
        %v928 = vadd.f32 %v916, %v923
        %vm929 = vcmp.ge.f32.partialorder %v925, 0.0
        %vm930 = vcmp.ge.f32.partialorder %v926, 0.0
        %vm931 = vcmp.ge.f32.partialorder %v927, 0.0
        %vm932 = vcmp.ge.f32.partialorder %v928, 0.0
        %v933 = vmul.f32 %v925, 0.2
        %v934 = vmul.f32 %v926, 0.2
        %v935 = vmul.f32 %v927, 0.2
        %v936 = vmul.f32 %v928, 0.2
        %v937 = vsel %vm929, %v925, %v933
        %v938 = vsel %vm930, %v926, %v934
        %v939 = vsel %vm931, %v927, %v935
        %v940 = vsel %vm932, %v928, %v936
        %941 = vrot.lane.b32.xlu0 %v937, 17
        %v942 = vpop.permute.xlu0 %941
        %943 = vrot.lane.b32.xlu0 %v939, 17
        %v944 = vpop.permute.xlu0 %943
        %945 = vrot.lane.b32.xlu0 %v938, 17
        %v946 = vpop.permute.xlu0 %945
        %947 = vrot.lane.b32.xlu0 %v940, 17
        %v948 = vpop.permute.xlu0 %947
        %v949 = vsel %vm471, %v942, %v946
        %v950 = vsel %vm471, %v944, %v948
        %v951 = vsel %vm471, %v946, %v942
        %v952 = vsel %vm471, %v948, %v944
        %v953 = vmul.f32 %v951, %v480
        %v954 = vmul.f32 %v949, %v484
        %v955 = vmul.f32 %v952, %v480
        %v956 = vmul.f32 %v950, %v484
        %v957 = vpack.c.bf16 %v955, %v953
        %v958 = vpack.c.bf16 %v956, %v954
        %959 = vrot.lane.b32.xlu0 %v937, 16
        %v960 = vpop.permute.xlu0 %959
        %961 = vrot.lane.b32.xlu0 %v939, 16
        %v962 = vpop.permute.xlu0 %961
        %963 = vrot.lane.b32.xlu0 %v938, 16
        %v964 = vpop.permute.xlu0 %963
        %965 = vrot.lane.b32.xlu0 %v940, 16
        %v966 = vpop.permute.xlu0 %965
        %v967 = vsel %vm501, %v960, %v964
        %v968 = vsel %vm501, %v962, %v966
        %v969 = vsel %vm501, %v964, %v960
        %v970 = vsel %vm501, %v966, %v962
        %v971 = vmul.f32 %v969, %v510
        %v972 = vmul.f32 %v967, %v514
        %v973 = vmul.f32 %v970, %v510
        %v974 = vmul.f32 %v968, %v514
        %v975 = vpack.c.bf16 %v973, %v971
        %v976 = vpack.c.bf16 %v974, %v972
        %977 = vrot.lane.b32.xlu0 %v937, 15
        %v978 = vpop.permute.xlu0 %977
        %979 = vrot.lane.b32.xlu0 %v939, 15
        %v980 = vpop.permute.xlu0 %979
        %981 = vrot.lane.b32.xlu0 %v938, 15
        %v982 = vpop.permute.xlu0 %981
        %983 = vrot.lane.b32.xlu0 %v940, 15
        %v984 = vpop.permute.xlu0 %983
        %v985 = vsel %vm531, %v978, %v982
        %v986 = vsel %vm531, %v980, %v984
        %v987 = vsel %vm531, %v982, %v978
        %v988 = vsel %vm531, %v984, %v980
        %v989 = vmul.f32 %v987, %v540
        %v990 = vmul.f32 %v985, %v544
        %v991 = vmul.f32 %v988, %v540
        %v992 = vmul.f32 %v986, %v544
        %v993 = vpack.c.bf16 %v991, %v989
        %v994 = vpack.c.bf16 %v992, %v990
        %995 = vrot.lane.b32.xlu0 %v937, 1
        %v996 = vpop.permute.xlu0 %995
        %997 = vrot.lane.b32.xlu0 %v939, 1
        %v998 = vpop.permute.xlu0 %997
        %999 = vrot.lane.b32.xlu0 %v938, 1
        %v1000 = vpop.permute.xlu0 %999
        %1001 = vrot.lane.b32.xlu0 %v940, 1
        %v1002 = vpop.permute.xlu0 %1001
        %v1003 = vsel %vm561, %v996, %v1000
        %v1004 = vsel %vm561, %v998, %v1002
        %v1005 = vsel %vm561, %v1000, %v996
        %v1006 = vsel %vm561, %v1002, %v998
        %v1007 = vmul.f32 %v1005, %v570
        %v1008 = vmul.f32 %v1003, %v574
        %v1009 = vmul.f32 %v1006, %v570
        %v1010 = vmul.f32 %v1004, %v574
        %v1011 = vpack.c.bf16 %v1009, %v1007
        %v1012 = vpack.c.bf16 %v1010, %v1008
        %v1013 = vpack.c.bf16 %v939, %v937
        %v1014 = vpack.c.bf16 %v940, %v938
        %1015 = vrot.lane.b32.xlu0 %v937, 127
        %v1016 = vpop.permute.xlu0 %1015
        %1017 = vrot.lane.b32.xlu0 %v939, 127
        %v1018 = vpop.permute.xlu0 %1017
        %1019 = vrot.lane.b32.xlu0 %v938, 127
        %v1020 = vpop.permute.xlu0 %1019
        %1021 = vrot.lane.b32.xlu0 %v940, 127
        %v1022 = vpop.permute.xlu0 %1021
        %v1023 = vsel %vm593, %v1016, %v1020
        %v1024 = vsel %vm593, %v1018, %v1022
        %v1025 = vsel %vm593, %v1020, %v1016
        %v1026 = vsel %vm593, %v1022, %v1018
        %v1027 = vmul.f32 %v1023, %v602
        %v1028 = vmul.f32 %v1025, %v606
        %v1029 = vmul.f32 %v1024, %v602
        %v1030 = vmul.f32 %v1026, %v606
        %v1031 = vpack.c.bf16 %v1029, %v1027
        %v1032 = vpack.c.bf16 %v1030, %v1028
        %1033 = vrot.lane.b32.xlu0 %v937, 113
        %v1034 = vpop.permute.xlu0 %1033
        %1035 = vrot.lane.b32.xlu0 %v939, 113
        %v1036 = vpop.permute.xlu0 %1035
        %1037 = vrot.lane.b32.xlu0 %v938, 113
        %v1038 = vpop.permute.xlu0 %1037
        %1039 = vrot.lane.b32.xlu0 %v940, 113
        %v1040 = vpop.permute.xlu0 %1039
        %v1041 = vsel %vm623, %v1034, %v1038
        %v1042 = vsel %vm623, %v1036, %v1040
        %v1043 = vsel %vm623, %v1038, %v1034
        %v1044 = vsel %vm623, %v1040, %v1036
        %v1045 = vmul.f32 %v1041, %v632
        %v1046 = vmul.f32 %v1043, %v636
        %v1047 = vmul.f32 %v1042, %v632
        %v1048 = vmul.f32 %v1044, %v636
        %v1049 = vpack.c.bf16 %v1047, %v1045
        %v1050 = vpack.c.bf16 %v1048, %v1046
        %1051 = vrot.lane.b32.xlu0 %v937, 112
        %v1052 = vpop.permute.xlu0 %1051
        %1053 = vrot.lane.b32.xlu0 %v939, 112
        %v1054 = vpop.permute.xlu0 %1053
        %1055 = vrot.lane.b32.xlu0 %v938, 112
        %v1056 = vpop.permute.xlu0 %1055
        %1057 = vrot.lane.b32.xlu0 %v940, 112
        %v1058 = vpop.permute.xlu0 %1057
        %v1059 = vsel %vm653, %v1052, %v1056
        %v1060 = vsel %vm653, %v1054, %v1058
        %v1061 = vsel %vm653, %v1056, %v1052
        %v1062 = vsel %vm653, %v1058, %v1054
        %v1063 = vmul.f32 %v1059, %v662
        %v1064 = vmul.f32 %v1061, %v666
        %v1065 = vmul.f32 %v1060, %v662
        %v1066 = vmul.f32 %v1062, %v666
        %v1067 = vpack.c.bf16 %v1065, %v1063
        %v1068 = vpack.c.bf16 %v1066, %v1064
        %1069 = vrot.lane.b32.xlu0 %v937, 111
        %v1070 = vpop.permute.xlu0 %1069
        %1071 = vrot.lane.b32.xlu0 %v939, 111
        %v1072 = vpop.permute.xlu0 %1071
        %1073 = vrot.lane.b32.xlu0 %v938, 111
        %v1074 = vpop.permute.xlu0 %1073
        %1075 = vrot.lane.b32.xlu0 %v940, 111
        %v1076 = vpop.permute.xlu0 %1075
        %v1077 = vsel %vm683, %v1070, %v1074
        %v1078 = vsel %vm683, %v1072, %v1076
        %v1079 = vsel %vm683, %v1074, %v1070
        %v1080 = vsel %vm683, %v1076, %v1072
        %v1081 = vmul.f32 %v1077, %v692
        %v1082 = vmul.f32 %v1079, %v696
        %v1083 = vmul.f32 %v1078, %v692
        %v1084 = vmul.f32 %v1080, %v696
        %v1085 = vpack.c.bf16 %v1083, %v1081
        %v1086 = vpack.c.bf16 %v1084, %v1082
        %v1087 = vld [vmem:[%s4] sm:$0xff]
        %v1088 = vld [vmem:[%s4 + $0x8] sm:$0xff]
        %1089 = vset.pattern.permute.xlu0 5
        %1090 = vperm.xlu0 %1089, %v263
        %v1091 = vpop.permute.xlu0 %1090
        %1093 = vset.pattern.permute.xlu0 5
        %1094 = vperm.xlu0 %1093, %v264
        %v1095 = vpop.permute.xlu0 %1094
        %v1099 = vunpack.c.l.b16 %v1087
        %v1100 = vunpack.c.h.b16 %v1087
        %v1101 = vunpack.c.l.b16 %v1088
        %v1102 = vunpack.c.h.b16 %v1088
        %v1103 = vpack.c.b16 %v1101, %v1099
        %v1104 = vpack.c.b16 %v1102, %v1100
        %v1107 = vsel %vm724, %v1104, 0
        %1109 = vmatprep.subr.bf16.mxu0 %v958
        %1110 = vmatpush1.bf16.msra.mxu0 %v957
        %1111 = vmatprep.subr.bf16.mxu0 %v976
        %1112 = vmatpush1.bf16.msra.mxu0 %v975
        %1113 = vmatprep.subr.bf16.mxu0 %v994
        %1114 = vmatpush1.bf16.msra.mxu0 %v993
        %1115 = vmatprep.subr.bf16.mxu0 %v1012
        %1116 = vmatpush1.bf16.msra.mxu0 %v1011
        %1117 = vmatprep.subr.bf16.mxu0 %v1014
        %1118 = vmatpush1.bf16.msra.mxu0 %v1013
        %1119 = vmatprep.subr.bf16.mxu0 %v1032
        %1120 = vmatpush1.bf16.msra.mxu0 %v1031
        %1121 = vmatprep.subr.bf16.mxu0 %v1050
        %1122 = vmatpush1.bf16.msra.mxu0 %v1049
        %1123 = vmatprep.subr.bf16.mxu0 %v1068
        %1124 = vmatpush1.bf16.msra.mxu0 %v1067
        %1125 = vmatprep.subr.bf16.mxu0 %v1086
        %1126 = vmatpush1.bf16.msra.mxu0 %v1085
        %1127 = vmatprep.subr.bf16.mxu0 0
        %1128 = vmatpush1.bf16.msra.mxu0 0
        %1129 = vmatprep.subr.bf16.mxu0 0
        %1130 = vmatpush1.bf16.msra.mxu0 0
        %1131 = vmatprep.subr.bf16.mxu0 0
        %1132 = vmatpush1.bf16.msra.mxu0 0
        %1133 = vmatprep.subr.bf16.mxu0 0
        %1134 = vmatpush1.bf16.msra.mxu0 0
        %1135 = vmatprep.subr.bf16.mxu0 0
        %1136 = vmatpush1.bf16.msra.mxu0 0
        %1137 = vmatprep.subr.bf16.mxu0 0
        %1138 = vmatpush1.bf16.msra.mxu0 0
        %1139 = vmatprep.subr.bf16.mxu0 0
        %1140 = vmatpush1.bf16.msra.mxu0 0
        %1141 = vmatprep.mubr.bf16.mxu0 %v1107
        %1142 = vmatmul.mubr.bf16.gmra.mrb[0].mxu0 %v1103
        %v1143 = vpop.f32.mrb[0].mxu0
        %v1144 = vadd.f32 %v1091, %v1143
        %v1145 = vpop.f32.mrb[0].mxu0
        %v1146 = vadd.f32 %v1091, %v1145
        %v1147 = vpop.f32.mrb[0].mxu0
        %v1148 = vadd.f32 %v1095, %v1147
        %v1149 = vpop.f32.mrb[0].mxu0
        %v1150 = vadd.f32 %v1095, %v1149
        %1151 = vdwg.mxu0
        %v1152 = vadd.f32 %v259, %v1144
        %v1153 = vadd.f32 %v260, %v1146
        %v1154 = vadd.f32 %v261, %v1148
        %v1155 = vadd.f32 %v262, %v1150
        %1156 = vst [vmem:[%s257] sm:$0xff] %v1152
        %1157 = vst [vmem:[%s257 + $0x8] sm:$0xff] %v1153
        %1158 = vst [vmem:[%s257 + $0x10] sm:$0xff] %v1154
        %1159 = vst [vmem:[%s257 + $0x18] sm:$0xff] %v1155
        %s1160 = sand.u32 %s141, 1
        %s1161 = scalar_lea.sflag [#allocation4], %s1160
        %s1162 = sand.u32 %s141, 1
        %s1163 = smul.addr %s1162, 32
        %s1164 = scalar_lea.vmem [#allocation7], %s1163
        // Predicated region
        $region49: #{tpu_custom_call.1} parent=39 // pred_check
          %p1165 = pneg %p151
        $region50: #{tpu_custom_call.1} parent=39 // pred_check_branch
          %1167 = sbr.rel (%p1165) target = $region52
        $region51: #{tpu_custom_call.1} parent=39 // pred_region
          %s1169 = ssub.s32 512, 512
          %1170 = vsyncadd %s1161, %s1169
          %s1171 = smul.addr %s23, 4
          %s1172 = smul.addr %s1171, 128
          %s1173 = scalar_lea.hbm %s5, %s1172
          %s1174 = sshll.u32 %s1164, 4
          %s1175 = int_to_ptr.vmem [resolvable:$true] %s1174
          %1180 = dma.vmem_to_hbm [thread:$0]  %s1175, 512, %s1173, %s1161, 256, 256, 16
        $region52: #{tpu_custom_call.1} parent=39 // pred_fallthru
          _
      $region40: #{tpu_custom_call.1} parent=5 // pred_fallthru
        _
      %p1181 = scmp.le.s32.totalorder 2, %s18
      // Predicated region
      $region53: #{tpu_custom_call.1} parent=5 // pred_check
        %p1182 = pneg %p1181
      $region54: #{tpu_custom_call.1} parent=5 // pred_check_branch
        %1184 = sbr.rel (%p1182) target = $region56
      $region55: #{tpu_custom_call.1} parent=5 // pred_region
        %s1185 = ssub.s32 %s18, 2
        // Predicated region
        $region57: #{tpu_custom_call.1} parent=55 // pred_check
          %p1186 = pneg %p157
        $region58: #{tpu_custom_call.1} parent=55 // pred_check_branch
          %1188 = sbr.rel (%p1186) target = $region60
        $region59: #{tpu_custom_call.1} parent=55 // pred_region
          %s1189 = sand.u32 %s142, 1
          %s1190 = scalar_lea.sflag [#allocation4], %s1189
          %s1191 = sand.u32 %s142, 1
          %s1192 = smul.addr %s1191, 32
          %s1193 = scalar_lea.vmem [#allocation7], %s1192
          %1194 = dma.done %s1190, 512
        $region60: #{tpu_custom_call.1} parent=55 // pred_fallthru
          _
      $region56: #{tpu_custom_call.1} parent=5 // pred_fallthru
        _
    $region6: #{tpu_custom_call.1} parent=1 // loop_footer
      %s22 = sadd.s32 1, %s18
    $region7: #{tpu_custom_call.1} parent=1 // loop_footer_branch
      %17 = sbr.rel target = $region3
    $region8: #{tpu_custom_call.1} parent=1 // loop_exit
      _
    %1195 = vsyncpa [#allocation3], 1
    %s1196 = scalar_lea.sflag [#allocation3], 1
    %1197 = vsyncpa %s1196, 1
    %1198 = vsyncpa [#allocation6], 1
    %1199 = vsyncpa [#allocation4], 1
    %s1200 = scalar_lea.sflag [#allocation4], 1
    %1201 = vsyncpa %s1200, 1

</llo_original>
